<compile_context>
chip_gen: v5e
topology: v5e:2x2
jax: 0.10.0
libtpu: 0.0.40
codegen_flags: <defaults>
</compile_context>

<pallas_src>
import functools

import jax
import jax.numpy as jnp
from jax.experimental import pallas as pl
from jax.experimental.pallas import tpu as pltpu


def _ru(x, m):
    return ((x + m - 1) // m) * m


def _ceil_div(a, b):
    return -(-a // b)


def _pick_tk(Kp, max_tk=2048):
    """Largest tk (multiple of 128, <= max_tk) that evenly divides Kp."""
    kb = Kp // 128
    best = 1
    for d in range(1, kb + 1):
        if kb % d == 0 and d * 128 <= max_tk:
            best = d
    return best * 128


def _pad2(a, rows, cols):
    r, c = a.shape
    if r == rows and c == cols:
        return a
    return jnp.pad(a, ((0, rows - r), (0, cols - c)))


# -----------------------------------------------------------------------------
# Pallas kernels
# -----------------------------------------------------------------------------
def _matmul_bn_kernel(*refs, relu, has_res):
    """acc += x @ w (bf16 -> f32); epilogue: y = acc*scale + bias (+res) (+relu) -> bf16."""
    if has_res:
        x_ref, w_ref, s_ref, b_ref, r_ref, o_ref, acc_ref = refs
    else:
        x_ref, w_ref, s_ref, b_ref, o_ref, acc_ref = refs
        r_ref = None
    k = pl.program_id(2)

    @pl.when(k == 0)
    def _():
        acc_ref[...] = jnp.zeros_like(acc_ref)

    acc_ref[...] += jnp.dot(x_ref[...], w_ref[...],
                            preferred_element_type=jnp.float32)

    @pl.when(k == pl.num_programs(2) - 1)
    def _():
        y = acc_ref[...] * s_ref[...] + b_ref[...]
        if has_res:
            y = y + r_ref[...].astype(jnp.float32)
        if relu:
            y = jnp.maximum(y, 0.0)
        o_ref[...] = y.astype(o_ref.dtype)


def fused_matmul_bn(x, w, scale, bias, residual=None, *, relu):
    """y = act((x @ w) * scale + bias [+ residual]) — conv-as-matmul, folded BN epilogue."""
    M, K = x.shape
    _, N = w.shape
    Kp = _ru(K, 128)
    tk = _pick_tk(Kp)
    # tm up to 256: layer3/layer4 (M=256) keep their big weights in a single M pass.
    tm = min(256, _ru(M, 8))
    # tn=256 keeps an N-parallel axis for v7x megacore; widen to 512 only for very wide K
    # (PSP bottleneck) so the heavy im2col slab is streamed from HBM once.
    if Kp >= 8192 and N % 512 == 0:
        tn = 512
    else:
        tn = min(256, _ru(N, 128))
    Mp, Np = _ru(M, tm), _ru(N, tn)

    xp = _pad2(x.astype(jnp.bfloat16), Mp, Kp)
    wp = _pad2(w.astype(jnp.bfloat16), Kp, Np)
    sp = _pad2(scale.astype(jnp.float32).reshape(1, N), 1, Np)
    bp = _pad2(bias.astype(jnp.float32).reshape(1, N), 1, Np)

    in_specs = [
        pl.BlockSpec((tm, tk), lambda i, j, k: (i, k)),
        pl.BlockSpec((tk, tn), lambda i, j, k: (k, j)),
        pl.BlockSpec((1, tn), lambda i, j, k: (0, j)),
        pl.BlockSpec((1, tn), lambda i, j, k: (0, j)),
    ]
    args = [xp, wp, sp, bp]
    has_res = residual is not None
    if has_res:
        args.append(_pad2(residual.astype(jnp.bfloat16), Mp, Np))
        in_specs.append(pl.BlockSpec((tm, tn), lambda i, j, k: (i, j)))

    out = pl.pallas_call(
        functools.partial(_matmul_bn_kernel, relu=relu, has_res=has_res),
        out_shape=jax.ShapeDtypeStruct((Mp, Np), jnp.bfloat16),
        grid_spec=pltpu.PrefetchScalarGridSpec(
            num_scalar_prefetch=0,
            grid=(Mp // tm, Np // tn, Kp // tk),
            in_specs=in_specs,
            out_specs=pl.BlockSpec((tm, tn), lambda i, j, k: (i, j)),
            scratch_shapes=[pltpu.VMEM((tm, tn), jnp.float32)]),
        compiler_params=pltpu.CompilerParams(
            dimension_semantics=("parallel", "parallel", "arbitrary"),
            vmem_limit_bytes=32 * 1024 * 1024),
    )(*args)
    if Mp != M or Np != N:
        out = out[:M, :N]
    return out


def _abs_diff_kernel(a_ref, b_ref, o_ref):
    o_ref[...] = jnp.abs(a_ref[...] - b_ref[...])


@jax.jit
def abs_diff(a, b):
    N, H, W, C = a.shape
    M = N * H * W
    a2 = a.reshape(M, C)
    b2 = b.reshape(M, C)
    tm = min(256, _ru(M, 8))
    Mp = _ru(M, tm)
    if Mp != M:
        a2 = jnp.pad(a2, ((0, Mp - M), (0, 0)))
        b2 = jnp.pad(b2, ((0, Mp - M), (0, 0)))
    out = pl.pallas_call(
        _abs_diff_kernel,
        out_shape=jax.ShapeDtypeStruct((Mp, C), a.dtype),
        grid_spec=pltpu.PrefetchScalarGridSpec(
            num_scalar_prefetch=0,
            grid=(Mp // tm,),
            in_specs=[pl.BlockSpec((tm, C), lambda i: (i, 0)),
                      pl.BlockSpec((tm, C), lambda i: (i, 0))],
            out_specs=pl.BlockSpec((tm, C), lambda i: (i, 0))),
        compiler_params=pltpu.CompilerParams(
            dimension_semantics=("parallel",),
            vmem_limit_bytes=32 * 1024 * 1024),
    )(a2, b2)
    if Mp != M:
        out = out[:M]
    return out.reshape(N, H, W, C)


# -----------------------------------------------------------------------------
# Conv (im2col glue) + fused Pallas matmul/BN/residual/ReLU
# -----------------------------------------------------------------------------
def conv_bn(x, p, *, stride=1, padding=0, dilation=1, relu=True, residual=None):
    """Conv2d(bias=False) + BN(eval, folded) + optional residual add + optional ReLU, NHWC."""
    # TODO(synk): im2col patches are still materialized (in bf16) rather than streamed via a
    #             tap-indexed BlockSpec; acceptable at these small spatial sizes.
    w = p["w"]                                     # (KH, KW, Cin, Cout), bf16
    kh, kw, cin, cout = w.shape
    N, H, W, C = x.shape
    if kh == 1 and kw == 1:
        xs = x if stride == 1 else x[:, ::stride, ::stride, :]
        oh, ow = xs.shape[1], xs.shape[2]
        patches = xs.reshape(N * oh * ow, C)
    else:
        xp = x if padding == 0 else jnp.pad(
            x, ((0, 0), (padding, padding), (padding, padding), (0, 0)))
        oh = (H + 2 * padding - dilation * (kh - 1) - 1) // stride + 1
        ow = (W + 2 * padding - dilation * (kw - 1) - 1) // stride + 1
        cols = []
        for i in range(kh):
            for j in range(kw):
                cols.append(
                    xp[:, i * dilation:i * dilation + stride * (oh - 1) + 1:stride,
                       j * dilation:j * dilation + stride * (ow - 1) + 1:stride, :])
        patches = jnp.concatenate(cols, axis=-1).reshape(N * oh * ow, kh * kw * C)
    res_flat = None if residual is None else residual.reshape(N * oh * ow, cout)
    out = fused_matmul_bn(patches, w.reshape(kh * kw * cin, cout),
                          p["scale"], p["bias"], res_flat, relu=relu)
    return out.reshape(N, oh, ow, cout)


def max_pool_3x3_s2_p1(x):
    """nn.MaxPool2d(3, stride=2, padding=1) on NHWC via a maximum reduction tree
    (no 9x stacked HBM copy; XLA fuses the shifted slices into the max)."""
    N, H, W, C = x.shape
    oh = (H + 2 - 3) // 2 + 1
    ow = (W + 2 - 3) // 2 + 1
    xp = jnp.pad(x, ((0, 0), (1, 1), (1, 1), (0, 0)), constant_values=-jnp.inf)
    out = None
    for i in range(3):
        for j in range(3):
            tap = xp[:, i:i + 2 * (oh - 1) + 1:2, j:j + 2 * (ow - 1) + 1:2, :]
            out = tap if out is None else jnp.maximum(out, tap)
    return out


# -----------------------------------------------------------------------------
# Jitted model pieces (cached per shape; layer3's 22 identical blocks reuse one compile)
# -----------------------------------------------------------------------------
@jax.jit
def stem_forward(x, stem):
    x = conv_bn(x, stem[0], stride=2, padding=1)
    x = conv_bn(x, stem[1], stride=1, padding=1)
    x = conv_bn(x, stem[2], stride=1, padding=1)
    return max_pool_3x3_s2_p1(x)


@functools.partial(jax.jit, static_argnames=("stride", "dilation"))
def bottleneck_forward(x, p, *, stride, dilation):
    if "down" in p:
        identity = conv_bn(x, p["down"], stride=stride, relu=False)
    else:
        identity = x
    out = conv_bn(x, p["conv1"], relu=True)
    out = conv_bn(out, p["conv2"], stride=stride, padding=dilation,
                  dilation=dilation, relu=True)
    # conv3 + BN + residual add + ReLU fused into one Pallas epilogue.
    return conv_bn(out, p["conv3"], relu=True, residual=identity)


def adaptive_avg_pool(x, out_sz):
    # PyTorch AdaptiveAvgPool2d semantics; tiny (<=36 positions) reduction kept in plain JAX.
    N, H, W, C = x.shape
    xf = x.astype(jnp.float32)
    rows = []
    for i in range(out_sz):
        hs, he = (i * H) // out_sz, _ceil_div((i + 1) * H, out_sz)
        cols = []
        for j in range(out_sz):
            ws, we = (j * W) // out_sz, _ceil_div((j + 1) * W, out_sz)
            cols.append(jnp.mean(xf[:, hs:he, ws:we, :], axis=(1, 2)))
        rows.append(jnp.stack(cols, axis=1))
    return jnp.stack(rows, axis=1)                 # (N, out_sz, out_sz, C) f32


@functools.partial(jax.jit, static_argnames=("bins",))
def psp_forward(x, stages, bottleneck, *, bins):
    N, H, W, C = x.shape
    pyramids = [x]
    for b, sp in zip(bins, stages):
        pooled = adaptive_avg_pool(x, b)
        y = conv_bn(pooled, sp, relu=True)                       # 1x1 conv+BN+ReLU (Pallas)
        # bilinear upsample, align_corners=False (matches the spec) — plain-JAX glue
        y = jax.image.resize(y.astype(jnp.float32), (N, H, W, y.shape[-1]),
                             method="bilinear").astype(x.dtype)
        pyramids.append(y)
    cat = jnp.concatenate(pyramids, axis=-1)                     # (N, H, W, 4096)
    return conv_bn(cat, bottleneck, padding=1, relu=True)


# -----------------------------------------------------------------------------
# Parameter construction (deterministic, synthetic)
# -----------------------------------------------------------------------------
class _KeyGen:
    def __init__(self, key):
        self._key = key

    def __call__(self):
        self._key, k = jax.random.split(self._key)
        return k


def make_conv_bn_params(kg, cin, cout, ksize):
    fan_in = cin * ksize * ksize
    w = (jax.random.normal(kg(), (ksize, ksize, cin, cout), jnp.float32)
         * jnp.sqrt(2.0 / fan_in)).astype(jnp.bfloat16)
    gamma = 1.0 + 0.1 * jax.random.normal(kg(), (cout,), jnp.float32)
    beta = 0.05 * jax.random.normal(kg(), (cout,), jnp.float32)
    r_mean = 0.05 * jax.random.normal(kg(), (cout,), jnp.float32)
    r_var = 1.0 + 0.1 * jax.random.uniform(kg(), (cout,), jnp.float32)
    inv = 1.0 / jnp.sqrt(r_var + 1e-5)
    scale = gamma * inv
    bias = beta - r_mean * scale
    return {"w": w, "scale": scale, "bias": bias}


def make_bottleneck_params(kg, inplanes, planes, downsample):
    p = {"conv1": make_conv_bn_params(kg, inplanes, planes, 1),
         "conv2": make_conv_bn_params(kg, planes, planes, 3),
         "conv3": make_conv_bn_params(kg, planes, planes * 4, 1)}
    if downsample:
        p["down"] = make_conv_bn_params(kg, inplanes, planes * 4, 1)
    return p


def make_layer_params(kg, inplanes, planes, blocks, stride, dilations):
    blks = [make_bottleneck_params(kg, inplanes, planes, True)]
    for _ in range(blocks - 1):
        blks.append(make_bottleneck_params(kg, planes * 4, planes, False))
    cfg = [(stride, dilations[0])] + [(1, d) for d in dilations[1:]]
    return {"blocks": blks, "cfg": cfg}


def build_params(key):
    kg = _KeyGen(key)
    params = {
        # deepbase stem: 3x(conv3x3+BN+ReLU) then 3x3/s2 maxpool
        "stem": [make_conv_bn_params(kg, 3, 64, 3),
                 make_conv_bn_params(kg, 64, 64, 3),
                 make_conv_bn_params(kg, 64, 128, 3)],
        # ResNet-101: 3 / 4 / 23 / 3 bottleneck blocks
        "layer1": make_layer_params(kg, 128, 64, 3, 1, [1] * 3),
        "layer2": make_layer_params(kg, 256, 128, 4, 2, [1] * 4),
        # dilated8: layer3/layer4 keep stride 1; first block gets dilation//2
        "layer3": make_layer_params(kg, 512, 256, 23, 1, [1] + [2] * 22),
        "layer4": make_layer_params(kg, 1024, 512, 3, 1, [2, 4, 4]),
    }
    bins = (1, 2, 3, 6)
    out_ch = 2048 // len(bins)                   # 512
    params["psp"] = {
        "bins": bins,
        "stages": [make_conv_bn_params(kg, 2048, out_ch, 1) for _ in bins],
        "bottleneck": make_conv_bn_params(kg, 2048 + out_ch * len(bins), out_ch, 3),
    }
    return params


# -----------------------------------------------------------------------------
# Model forward
# -----------------------------------------------------------------------------
def base_forward(x, params):
    x = stem_forward(x, params["stem"])
    for name in ("layer1", "layer2", "layer3", "layer4"):
        layer = params[name]
        for bp, (stride, dil) in zip(layer["blocks"], layer["cfg"]):
            x = bottleneck_forward(x, bp, stride=stride, dilation=dil)
    return x


def encoder_resnet101_forward(A, B, params):
    """A, B: NCHW float32 (PyTorch convention). Returns NCHW (N, 512, H/8, W/8)."""
    n = A.shape[0]
    # Batch the two shared-weight branches so backbone weights stream from HBM once.
    x = jnp.concatenate([A, B], axis=0)
    x = jnp.transpose(x, (0, 2, 3, 1)).astype(jnp.bfloat16)      # NHWC bf16
    x = base_forward(x, params)
    a, b = x[:n], x[n:]
    diff = abs_diff(a, b)                                        # |a - b| (Pallas VPU)
    out = psp_forward(diff, params["psp"]["stages"], params["psp"]["bottleneck"],
                      bins=params["psp"]["bins"])
    return jnp.transpose(out, (0, 3, 1, 2)).astype(jnp.float32)


if __name__ == "__main__":
    root = jax.random.PRNGKey(0)
    kp, ka, kb = jax.random.split(root, 3)
    params = build_params(kp)

    # Small inputs: batch=2, RGB, 64x64 -> output (2, 512, 8, 8)
    A = jax.random.normal(ka, (2, 3, 64, 64), jnp.float32)
    B = jax.random.normal(kb, (2, 3, 64, 64), jnp.float32)

    out = encoder_resnet101_forward(A, B, params)
    out = jax.block_until_ready(out)

    assert out.shape == (2, 512, 8, 8), out.shape
    assert bool(jnp.isfinite(out).all())
    print("KERNEL_OK")
</pallas_src>

<mosaic_0001>
module attributes {stable_mosaic.version = 11 : i64} {
  func.func @_matmul_bn_kernel(%arg0: i32, %arg1: i32, %arg2: i32, %arg3: memref<256x128xbf16, #tpu.memory_space<vmem>>, %arg4: memref<128x128xbf16, #tpu.memory_space<vmem>>, %arg5: memref<1x128xf32, #tpu.memory_space<vmem>>, %arg6: memref<1x128xf32, #tpu.memory_space<vmem>>, %arg7: memref<256x128xbf16, #tpu.memory_space<vmem>>, %arg8: memref<256x128xf32, #tpu.memory_space<vmem>>) attributes {dimension_semantics = [#tpu.dimension_semantics<parallel>, #tpu.dimension_semantics<parallel>, #tpu.dimension_semantics<arbitrary>], iteration_bounds = array<i64: 16, 1, 1>, scalar_prefetch = 0 : i64, scratch_operands = 1 : i64, tpu.core_type = #tpu.core_type<tc>, window_params = [{transform_indices = @transform_0, window_bounds = array<i64: 256, 128>}, {transform_indices = @transform_1, window_bounds = array<i64: 128, 128>}, {transform_indices = @transform_2, window_bounds = array<i64: 1, 128>}, {transform_indices = @transform_3, window_bounds = array<i64: 1, 128>}, {transform_indices = @transform_4, window_bounds = array<i64: 256, 128>}]} {
    %c0_i32 = arith.constant 0 : i32
    %0 = arith.cmpi eq, %arg2, %c0_i32 : i32
    %1 = arith.extui %0 : i1 to i32
    %c0_i32_0 = arith.constant 0 : i32
    %2 = arith.cmpi ne, %1, %c0_i32_0 : i32
    scf.if %2 {
      %cst_10 = arith.constant 0.000000e+00 : f32
      %12 = vector.broadcast %cst_10 : f32 to vector<256x128xf32>
      %c0_11 = arith.constant 0 : index
      %c0_12 = arith.constant 0 : index
      %13 = vector.load %arg8[%c0_11, %c0_12] : memref<256x128xf32, #tpu.memory_space<vmem>>, vector<256x128xf32>
      tpu.vector_store %arg8[%c0_11, %c0_12], %12 {strides = array<i32>} : memref<256x128xf32, #tpu.memory_space<vmem>>, vector<256x128xf32>,
    } else {
    }
    %c0 = arith.constant 0 : index
    %c0_1 = arith.constant 0 : index
    %3 = vector.load %arg8[%c0, %c0_1] : memref<256x128xf32, #tpu.memory_space<vmem>>, vector<256x128xf32>
    %c0_2 = arith.constant 0 : index
    %c0_3 = arith.constant 0 : index
    %4 = vector.load %arg3[%c0_2, %c0_3] : memref<256x128xbf16, #tpu.memory_space<vmem>>, vector<256x128xbf16>
    %c0_4 = arith.constant 0 : index
    %c0_5 = arith.constant 0 : index
    %5 = vector.load %arg4[%c0_4, %c0_5] : memref<128x128xbf16, #tpu.memory_space<vmem>>, vector<128x128xbf16>
    %cst = arith.constant dense<0.000000e+00> : vector<256x128xf32>
    %6 = tpu.matmul %4, %5, %cst {dimension_numbers = #tpu.dot_dimension_numbers<[1], [0], [0], [1], [0, 0, 1, 1], [], []>} : vector<256x128xbf16>, vector<128x128xbf16>, vector<256x128xf32> -> vector<256x128xf32>
    %7 = arith.addf %3, %6 : vector<256x128xf32>
    %c0_6 = arith.constant 0 : index
    %c0_7 = arith.constant 0 : index
    %8 = vector.load %arg8[%c0_6, %c0_7] : memref<256x128xf32, #tpu.memory_space<vmem>>, vector<256x128xf32>
    tpu.vector_store %arg8[%c0_6, %c0_7], %7 {strides = array<i32>} : memref<256x128xf32, #tpu.memory_space<vmem>>, vector<256x128xf32>,
    %c0_i32_8 = arith.constant 0 : i32
    %9 = arith.cmpi eq, %arg2, %c0_i32_8 : i32
    %10 = arith.extui %9 : i1 to i32
    %c0_i32_9 = arith.constant 0 : i32
    %11 = arith.cmpi ne, %10, %c0_i32_9 : i32
    scf.if %11 {
      %c0_10 = arith.constant 0 : index
      %c0_11 = arith.constant 0 : index
      %12 = vector.load %arg8[%c0_10, %c0_11] : memref<256x128xf32, #tpu.memory_space<vmem>>, vector<256x128xf32>
      %c0_12 = arith.constant 0 : index
      %c0_13 = arith.constant 0 : index
      %13 = vector.load %arg5[%c0_12, %c0_13] : memref<1x128xf32, #tpu.memory_space<vmem>>, vector<1x128xf32>
      %14 = vector.broadcast %13 : vector<1x128xf32> to vector<256x128xf32>
      %15 = arith.mulf %12, %14 : vector<256x128xf32>
      %c0_14 = arith.constant 0 : index
      %c0_15 = arith.constant 0 : index
      %16 = vector.load %arg6[%c0_14, %c0_15] : memref<1x128xf32, #tpu.memory_space<vmem>>, vector<1x128xf32>
      %17 = vector.broadcast %16 : vector<1x128xf32> to vector<256x128xf32>
      %18 = arith.addf %15, %17 : vector<256x128xf32>
      %cst_16 = arith.constant 0.000000e+00 : f32
      %19 = vector.broadcast %cst_16 : f32 to vector<256x128xf32>
      %20 = arith.maximumf %18, %19 : vector<256x128xf32>
      %21 = arith.truncf %20 : vector<256x128xf32> to vector<256x128xbf16>
      %c0_17 = arith.constant 0 : index
      %c0_18 = arith.constant 0 : index
      %22 = vector.load %arg7[%c0_17, %c0_18] : memref<256x128xbf16, #tpu.memory_space<vmem>>, vector<256x128xbf16>
      tpu.vector_store %arg7[%c0_17, %c0_18], %21 {strides = array<i32>} : memref<256x128xbf16, #tpu.memory_space<vmem>>, vector<256x128xbf16>,
    } else {
    }
    return
  }
  func.func @transform_0(%arg0: i32, %arg1: i32, %arg2: i32) -> (i32, i32) {
    %c0_i32 = arith.constant 0 : i32
    return %arg0, %arg2 : i32, i32
  }
  func.func @transform_1(%arg0: i32, %arg1: i32, %arg2: i32) -> (i32, i32) {
    %c0_i32 = arith.constant 0 : i32
    return %arg2, %arg1 : i32, i32
  }
  func.func @transform_2(%arg0: i32, %arg1: i32, %arg2: i32) -> (i32, i32) {
    %c0_i32 = arith.constant 0 : i32
    %c0_i32_0 = arith.constant 0 : i32
    return %c0_i32, %arg1 : i32, i32
  }
  func.func @transform_3(%arg0: i32, %arg1: i32, %arg2: i32) -> (i32, i32) {
    %c0_i32 = arith.constant 0 : i32
    %c0_i32_0 = arith.constant 0 : i32
    return %c0_i32, %arg1 : i32, i32
  }
  func.func @transform_4(%arg0: i32, %arg1: i32, %arg2: i32) -> (i32, i32) {
    %c0_i32 = arith.constant 0 : i32
    return %arg0, %arg1 : i32, i32
  }
}

module attributes {stable_mosaic.version = 11 : i64} {
  func.func @_matmul_bn_kernel(%arg0: i32, %arg1: i32, %arg2: i32, %arg3: memref<256x640xbf16, #tpu.memory_space<vmem>>, %arg4: memref<640x128xbf16, #tpu.memory_space<vmem>>, %arg5: memref<1x128xf32, #tpu.memory_space<vmem>>, %arg6: memref<1x128xf32, #tpu.memory_space<vmem>>, %arg7: memref<256x128xbf16, #tpu.memory_space<vmem>>, %arg8: memref<256x128xf32, #tpu.memory_space<vmem>>) attributes {dimension_semantics = [#tpu.dimension_semantics<parallel>, #tpu.dimension_semantics<parallel>, #tpu.dimension_semantics<arbitrary>], iteration_bounds = array<i64: 16, 1, 1>, scalar_prefetch = 0 : i64, scratch_operands = 1 : i64, tpu.core_type = #tpu.core_type<tc>, window_params = [{transform_indices = @transform_0, window_bounds = array<i64: 256, 640>}, {transform_indices = @transform_1, window_bounds = array<i64: 640, 128>}, {transform_indices = @transform_2, window_bounds = array<i64: 1, 128>}, {transform_indices = @transform_3, window_bounds = array<i64: 1, 128>}, {transform_indices = @transform_4, window_bounds = array<i64: 256, 128>}]} {
    %c0_i32 = arith.constant 0 : i32
    %0 = arith.cmpi eq, %arg2, %c0_i32 : i32
    %1 = arith.extui %0 : i1 to i32
    %c0_i32_0 = arith.constant 0 : i32
    %2 = arith.cmpi ne, %1, %c0_i32_0 : i32
    scf.if %2 {
      %cst_10 = arith.constant 0.000000e+00 : f32
      %12 = vector.broadcast %cst_10 : f32 to vector<256x128xf32>
      %c0_11 = arith.constant 0 : index
      %c0_12 = arith.constant 0 : index
      %13 = vector.load %arg8[%c0_11, %c0_12] : memref<256x128xf32, #tpu.memory_space<vmem>>, vector<256x128xf32>
      tpu.vector_store %arg8[%c0_11, %c0_12], %12 {strides = array<i32>} : memref<256x128xf32, #tpu.memory_space<vmem>>, vector<256x128xf32>,
    } else {
    }
    %c0 = arith.constant 0 : index
    %c0_1 = arith.constant 0 : index
    %3 = vector.load %arg8[%c0, %c0_1] : memref<256x128xf32, #tpu.memory_space<vmem>>, vector<256x128xf32>
    %c0_2 = arith.constant 0 : index
    %c0_3 = arith.constant 0 : index
    %4 = vector.load %arg3[%c0_2, %c0_3] : memref<256x640xbf16, #tpu.memory_space<vmem>>, vector<256x640xbf16>
    %c0_4 = arith.constant 0 : index
    %c0_5 = arith.constant 0 : index
    %5 = vector.load %arg4[%c0_4, %c0_5] : memref<640x128xbf16, #tpu.memory_space<vmem>>, vector<640x128xbf16>
    %cst = arith.constant dense<0.000000e+00> : vector<256x128xf32>
    %6 = tpu.matmul %4, %5, %cst {dimension_numbers = #tpu.dot_dimension_numbers<[1], [0], [0], [1], [0, 0, 1, 1], [], []>} : vector<256x640xbf16>, vector<640x128xbf16>, vector<256x128xf32> -> vector<256x128xf32>
    %7 = arith.addf %3, %6 : vector<256x128xf32>
    %c0_6 = arith.constant 0 : index
    %c0_7 = arith.constant 0 : index
    %8 = vector.load %arg8[%c0_6, %c0_7] : memref<256x128xf32, #tpu.memory_space<vmem>>, vector<256x128xf32>
    tpu.vector_store %arg8[%c0_6, %c0_7], %7 {strides = array<i32>} : memref<256x128xf32, #tpu.memory_space<vmem>>, vector<256x128xf32>,
    %c0_i32_8 = arith.constant 0 : i32
    %9 = arith.cmpi eq, %arg2, %c0_i32_8 : i32
    %10 = arith.extui %9 : i1 to i32
    %c0_i32_9 = arith.constant 0 : i32
    %11 = arith.cmpi ne, %10, %c0_i32_9 : i32
    scf.if %11 {
      %c0_10 = arith.constant 0 : index
      %c0_11 = arith.constant 0 : index
      %12 = vector.load %arg8[%c0_10, %c0_11] : memref<256x128xf32, #tpu.memory_space<vmem>>, vector<256x128xf32>
      %c0_12 = arith.constant 0 : index
      %c0_13 = arith.constant 0 : index
      %13 = vector.load %arg5[%c0_12, %c0_13] : memref<1x128xf32, #tpu.memory_space<vmem>>, vector<1x128xf32>
      %14 = vector.broadcast %13 : vector<1x128xf32> to vector<256x128xf32>
      %15 = arith.mulf %12, %14 : vector<256x128xf32>
      %c0_14 = arith.constant 0 : index
      %c0_15 = arith.constant 0 : index
      %16 = vector.load %arg6[%c0_14, %c0_15] : memref<1x128xf32, #tpu.memory_space<vmem>>, vector<1x128xf32>
      %17 = vector.broadcast %16 : vector<1x128xf32> to vector<256x128xf32>
      %18 = arith.addf %15, %17 : vector<256x128xf32>
      %cst_16 = arith.constant 0.000000e+00 : f32
      %19 = vector.broadcast %cst_16 : f32 to vector<256x128xf32>
      %20 = arith.maximumf %18, %19 : vector<256x128xf32>
      %21 = arith.truncf %20 : vector<256x128xf32> to vector<256x128xbf16>
      %c0_17 = arith.constant 0 : index
      %c0_18 = arith.constant 0 : index
      %22 = vector.load %arg7[%c0_17, %c0_18] : memref<256x128xbf16, #tpu.memory_space<vmem>>, vector<256x128xbf16>
      tpu.vector_store %arg7[%c0_17, %c0_18], %21 {strides = array<i32>} : memref<256x128xbf16, #tpu.memory_space<vmem>>, vector<256x128xbf16>,
    } else {
    }
    return
  }
  func.func @transform_0(%arg0: i32, %arg1: i32, %arg2: i32) -> (i32, i32) {
    %c0_i32 = arith.constant 0 : i32
    return %arg0, %arg2 : i32, i32
  }
  func.func @transform_1(%arg0: i32, %arg1: i32, %arg2: i32) -> (i32, i32) {
    %c0_i32 = arith.constant 0 : i32
    return %arg2, %arg1 : i32, i32
  }
  func.func @transform_2(%arg0: i32, %arg1: i32, %arg2: i32) -> (i32, i32) {
    %c0_i32 = arith.constant 0 : i32
    %c0_i32_0 = arith.constant 0 : i32
    return %c0_i32, %arg1 : i32, i32
  }
  func.func @transform_3(%arg0: i32, %arg1: i32, %arg2: i32) -> (i32, i32) {
    %c0_i32 = arith.constant 0 : i32
    %c0_i32_0 = arith.constant 0 : i32
    return %c0_i32, %arg1 : i32, i32
  }
  func.func @transform_4(%arg0: i32, %arg1: i32, %arg2: i32) -> (i32, i32) {
    %c0_i32 = arith.constant 0 : i32
    return %arg0, %arg1 : i32, i32
  }
}

</mosaic_0001>

<llo_original>
// kernel: stem_forward.3
$region0: #{stem_forward.3}
  #allocation0 [shape = 'u32[]', space=smem, size = 0x4, offset = 0x4, fixed_abs, tag = 'smem constant byte address 0x4 - core index']
  #allocation1 [shape = 'u32[72,128]{1,0:T(1,128)}', space=vmem, size = 0x9000, scoped, tag = 'internal scratch']
  #allocation2 [shape = 'f32[256,128]{1,0:T(8,128)}', space=vmem, size = 0x20000, scoped, tag = 'scratch operand']
  %s0 = inlined_call_operand.vmem [shape: bf16[4096,128], index: 0, kind: input, shape index: {}]
  %s1 = inlined_call_operand.vmem [shape: bf16[128,128], index: 1, kind: input, shape index: {}]
  %s2 = inlined_call_operand.vmem [shape: f32[1,128], index: 2, kind: input, shape index: {}]
  %s3 = inlined_call_operand.vmem [shape: f32[1,128], index: 3, kind: input, shape index: {}]
  %s4 = inlined_call_operand.vmem [shape: bf16[4096,128], index: 4, kind: output, shape index: {}]
  %s5 = sld [smem:[#allocation0]]
  $region57: #{stem_forward.3} parent=0
    _
  %s7 = ssub.s32 1, %s5
  %s8 = scalar_select 0, %s7, %s5
  loop: start=0, step=1, limit=18
  $region2: #{stem_forward.3} parent=0 // loop_pre_header
    _
  $region3: #{stem_forward.3} parent=0 // loop_header
    %s10 = sphi 0, %s14
    %p11 = scmp.ge.s32.totalorder %s10, 18
    %s17 = sphi 0, %s36
    %s18 = sphi 0, %s32
    %s19 = sphi 0, %s28
    %s20 = sphi 0, %s17
    %s21 = sphi 0, %s18
    %s22 = sphi 0, %s19
    %s23 = sphi 0, %s20
    %s24 = sphi 0, %s21
    %s25 = sphi 0, %s22
    %s41 = sphi 0, %s43
    %s44 = sphi 0, %s41
    %s45 = sphi 0, %s44
    %s61 = sphi 0, %s45
    %s69 = sphi 0, %s71
    %s72 = sphi 0, %s69
    %s73 = sphi 0, %s72
    %s89 = sphi 0, %s73
    %s95 = sphi 0, %s97
    %s98 = sphi 0, %s95
    %s99 = sphi 0, %s98
    %s115 = sphi 0, %s99
    %s121 = sphi 0, %s123
    %s124 = sphi 0, %s121
    %s125 = sphi 0, %s124
    %s141 = sphi 0, %s125
    %s149 = sphi 0, %s151
    %s152 = sphi 0, %s149
    %s153 = sphi 0, %s152
    %s169 = sphi 0, %s153
  $region4: #{stem_forward.3} parent=0 // loop_header_branch
    %13 = sbr.rel (%p11) target = $region8
  $region5: #{stem_forward.3} parent=0 // loop_body
    %s15 = ssub.s32 %s10, 1
    %s16 = ssub.s32 %s10, 2
    %s26 = sadd.s32 1, %s19
    %p27 = scmp.ge.s32.totalorder %s26, 1
    %s28 = scalar_select %p27, 0, %s26
    %s29 = sadd.s32 1, %s18
    %s30 = scalar_select %p27, %s29, %s18
    %p31 = scmp.ge.s32.totalorder %s30, 1
    %s32 = scalar_select %p31, 0, %s30
    %s33 = sadd.s32 1, %s17
    %s34 = scalar_select %p31, %s33, %s17
    %p35 = scmp.ge.s32.totalorder %s34, 16
    %s36 = scalar_select %p35, 0, %s34
    %s37 = ssub.s32 %s17, %s36
    %s38 = ssub.s32 %s19, %s28
    %s39 = sor.u32 %s37, %s38
    %p40 = scmp.eq.s32.totalorder %s39, 0
    %s42 = sadd.s32 %s41, 1
    %s43 = scalar_select %p40, %s41, %s42
    %p46 = pneg %p40
    %p47 = scmp.eq.s32.totalorder %s10, 15
    %p48 = por %p46, %p47
    %p49 = scmp.ne.s32.totalorder %s41, %s44
    %p50 = scmp.eq.s32.totalorder %s10, 0
    %p51 = por %p49, %p50
    %p52 = scmp.ne.s32.totalorder %s41, %s44
    %p53 = scmp.eq.s32.totalorder %s15, 15
    %p54 = por %p52, %p53
    %p55 = scmp.ne.s32.totalorder %s44, %s45
    %p56 = scmp.eq.s32.totalorder %s15, 0
    %p57 = por %p55, %p56
    %p58 = scmp.ne.s32.totalorder %s44, %s45
    %p59 = scmp.eq.s32.totalorder %s16, 15
    %p60 = por %p58, %p59
    %p62 = scmp.ne.s32.totalorder %s45, %s61
    %p63 = scmp.eq.s32.totalorder %s16, 0
    %p64 = por %p62, %p63
    %s65 = ssub.s32 %s19, %s28
    %s66 = ssub.s32 %s18, %s32
    %s67 = sor.u32 %s65, %s66
    %p68 = scmp.eq.s32.totalorder %s67, 0
    %s70 = sadd.s32 %s69, 1
    %s71 = scalar_select %p68, %s69, %s70
    %p74 = pneg %p68
    %p75 = scmp.eq.s32.totalorder %s10, 15
    %p76 = por %p74, %p75
    %p77 = scmp.ne.s32.totalorder %s69, %s72
    %p78 = scmp.eq.s32.totalorder %s10, 0
    %p79 = por %p77, %p78
    %p80 = scmp.ne.s32.totalorder %s69, %s72
    %p81 = scmp.eq.s32.totalorder %s15, 15
    %p82 = por %p80, %p81
    %p83 = scmp.ne.s32.totalorder %s72, %s73
    %p84 = scmp.eq.s32.totalorder %s15, 0
    %p85 = por %p83, %p84
    %p86 = scmp.ne.s32.totalorder %s72, %s73
    %p87 = scmp.eq.s32.totalorder %s16, 15
    %p88 = por %p86, %p87
    %p90 = scmp.ne.s32.totalorder %s73, %s89
    %p91 = scmp.eq.s32.totalorder %s16, 0
    %p92 = por %p90, %p91
    %s93 = ssub.s32 %s18, %s32
    %p94 = scmp.eq.s32.totalorder %s93, 0
    %s96 = sadd.s32 %s95, 1
    %s97 = scalar_select %p94, %s95, %s96
    %p100 = pneg %p94
    %p101 = scmp.eq.s32.totalorder %s10, 15
    %p102 = por %p100, %p101
    %p103 = scmp.ne.s32.totalorder %s95, %s98
    %p104 = scmp.eq.s32.totalorder %s10, 0
    %p105 = por %p103, %p104
    %p106 = scmp.ne.s32.totalorder %s95, %s98
    %p107 = scmp.eq.s32.totalorder %s15, 15
    %p108 = por %p106, %p107
    %p109 = scmp.ne.s32.totalorder %s98, %s99
    %p110 = scmp.eq.s32.totalorder %s15, 0
    %p111 = por %p109, %p110
    %p112 = scmp.ne.s32.totalorder %s98, %s99
    %p113 = scmp.eq.s32.totalorder %s16, 15
    %p114 = por %p112, %p113
    %p116 = scmp.ne.s32.totalorder %s99, %s115
    %p117 = scmp.eq.s32.totalorder %s16, 0
    %p118 = por %p116, %p117
    %s119 = ssub.s32 %s18, %s32
    %p120 = scmp.eq.s32.totalorder %s119, 0
    %s122 = sadd.s32 %s121, 1
    %s123 = scalar_select %p120, %s121, %s122
    %p126 = pneg %p120
    %p127 = scmp.eq.s32.totalorder %s10, 15
    %p128 = por %p126, %p127
    %p129 = scmp.ne.s32.totalorder %s121, %s124
    %p130 = scmp.eq.s32.totalorder %s10, 0
    %p131 = por %p129, %p130
    %p132 = scmp.ne.s32.totalorder %s121, %s124
    %p133 = scmp.eq.s32.totalorder %s15, 15
    %p134 = por %p132, %p133
    %p135 = scmp.ne.s32.totalorder %s124, %s125
    %p136 = scmp.eq.s32.totalorder %s15, 0
    %p137 = por %p135, %p136
    %p138 = scmp.ne.s32.totalorder %s124, %s125
    %p139 = scmp.eq.s32.totalorder %s16, 15
    %p140 = por %p138, %p139
    %p142 = scmp.ne.s32.totalorder %s125, %s141
    %p143 = scmp.eq.s32.totalorder %s16, 0
    %p144 = por %p142, %p143
    %s145 = ssub.s32 %s17, %s36
    %s146 = ssub.s32 %s18, %s32
    %s147 = sor.u32 %s145, %s146
    %p148 = scmp.eq.s32.totalorder %s147, 0
    %s150 = sadd.s32 %s149, 1
    %s151 = scalar_select %p148, %s149, %s150
    %p154 = pneg %p148
    %p155 = scmp.eq.s32.totalorder %s10, 15
    %p156 = por %p154, %p155
    %p157 = scmp.ne.s32.totalorder %s149, %s152
    %p158 = scmp.eq.s32.totalorder %s10, 0
    %p159 = por %p157, %p158
    %p160 = scmp.ne.s32.totalorder %s149, %s152
    %p161 = scmp.eq.s32.totalorder %s15, 15
    %p162 = por %p160, %p161
    %p163 = scmp.ne.s32.totalorder %s152, %s153
    %p164 = scmp.eq.s32.totalorder %s15, 0
    %p165 = por %p163, %p164
    %p166 = scmp.ne.s32.totalorder %s152, %s153
    %p167 = scmp.eq.s32.totalorder %s16, 15
    %p168 = por %p166, %p167
    %p170 = scmp.ne.s32.totalorder %s153, %s169
    %p171 = scmp.eq.s32.totalorder %s16, 0
    %p172 = por %p170, %p171
    %p173 = scmp.le.s32.totalorder 1, %s10
    %p174 = scmp.lt.s32.totalorder %s10, 17
    %p175 = pnand %p173, %p174
    %p176 = pneg %p175
    // Predicated region
    $region9: #{stem_forward.3} parent=5 // pred_check
      _
    $region10: #{stem_forward.3} parent=5 // pred_check_branch
      %178 = sbr.rel (%p175) target = $region12
    $region11: #{stem_forward.3} parent=5 // pred_region
      %s179 = ssub.s32 %s10, 1
      // Predicated region
      $region13: #{stem_forward.3} parent=11 // pred_check
        %p180 = pneg %p85
      $region14: #{stem_forward.3} parent=11 // pred_check_branch
        %182 = sbr.rel (%p180) target = $region16
      $region15: #{stem_forward.3} parent=11 // pred_region
        %s183 = smul.u32 16, %s22
        %p184 = scmp.lt.s32.totalorder %s183, 15
        %s185 = scalar_select %p184, %s183, 15
        %p186 = scmp.lt.s32.totalorder %s21, 0
        %s187 = scalar_select %p186, %s21, 0
        %s188 = sadd.s32 %s187, %s185
        %s189 = smul.addr %s188, 4
        %s190 = scalar_lea.vmem %s1, %s189
        %s191 = smul.u32 16, %s22
      $region16: #{stem_forward.3} parent=11 // pred_fallthru
        _
      // Predicated region
      $region17: #{stem_forward.3} parent=11 // pred_check
        %p192 = pneg %p111
      $region18: #{stem_forward.3} parent=11 // pred_check_branch
        %194 = sbr.rel (%p192) target = $region20
      $region19: #{stem_forward.3} parent=11 // pred_region
        %p195 = scmp.lt.s32.totalorder %s21, 0
        %s196 = scalar_select %p195, %s21, 0
        %s197 = scalar_lea.vmem %s2, %s196
      $region20: #{stem_forward.3} parent=11 // pred_fallthru
        _
      // Predicated region
      $region21: #{stem_forward.3} parent=11 // pred_check
        %p198 = pneg %p137
      $region22: #{stem_forward.3} parent=11 // pred_check_branch
        %200 = sbr.rel (%p198) target = $region24
      $region23: #{stem_forward.3} parent=11 // pred_region
        %p201 = scmp.lt.s32.totalorder %s21, 0
        %s202 = scalar_select %p201, %s21, 0
        %s203 = scalar_lea.vmem %s3, %s202
      $region24: #{stem_forward.3} parent=11 // pred_fallthru
        _
    $region12: #{stem_forward.3} parent=5 // pred_fallthru
      _
    %p204 = scmp.lt.s32.totalorder %s10, 16
    // Predicated region
    $region25: #{stem_forward.3} parent=5 // pred_check
      %p205 = pneg %p204
    $region26: #{stem_forward.3} parent=5 // pred_check_branch
      %207 = sbr.rel (%p205) target = $region28
    $region27: #{stem_forward.3} parent=5 // pred_region
      // Predicated region
      $region29: #{stem_forward.3} parent=27 // pred_check
        %p208 = pneg %p51
      $region30: #{stem_forward.3} parent=27 // pred_check_branch
        %210 = sbr.rel (%p208) target = $region32
      $region31: #{stem_forward.3} parent=27 // pred_region
        %s211 = smul.u32 32, %s17
        %p212 = scmp.lt.s32.totalorder %s211, 511
        %s213 = scalar_select %p212, %s211, 511
        %p214 = scmp.lt.s32.totalorder %s19, 0
        %s215 = scalar_select %p214, %s19, 0
        %s216 = sadd.s32 %s215, %s213
        %s217 = smul.addr %s216, 4
        %s218 = scalar_lea.vmem %s0, %s217
        %s219 = smul.u32 32, %s17
      $region32: #{stem_forward.3} parent=27 // pred_fallthru
        _
    $region28: #{stem_forward.3} parent=5 // pred_fallthru
      _
    %p220 = scmp.le.s32.totalorder 1, %s10
    %p221 = scmp.lt.s32.totalorder %s10, 17
    %p222 = pnand %p220, %p221
    %p223 = pneg %p222
    // Predicated region
    $region33: #{stem_forward.3} parent=5 // pred_check
      _
    $region34: #{stem_forward.3} parent=5 // pred_check_branch
      %225 = sbr.rel (%p222) target = $region36
    $region35: #{stem_forward.3} parent=5 // pred_region
      %s226 = ssub.s32 %s10, 1
      %s227 = smul.u32 32, %s20
      %p228 = scmp.lt.s32.totalorder %s227, 511
      %s229 = scalar_select %p228, %s227, 511
      %p230 = scmp.lt.s32.totalorder %s22, 0
      %s231 = scalar_select %p230, %s22, 0
      %s232 = sadd.s32 %s231, %s229
      %s233 = smul.addr %s232, 4
      %s234 = scalar_lea.vmem %s0, %s233
      %p235 = pneg %p57
      %p236 = pneg %p54
      %s237 = smul.u32 16, %s22
      %p238 = scmp.lt.s32.totalorder %s237, 15
      %s239 = scalar_select %p238, %s237, 15
      %p240 = scmp.lt.s32.totalorder %s21, 0
      %s241 = scalar_select %p240, %s21, 0
      %s242 = sadd.s32 %s241, %s239
      %s243 = smul.addr %s242, 4
      %s244 = scalar_lea.vmem %s1, %s243
      %p245 = pneg %p85
      %p246 = pneg %p82
      %p247 = scmp.lt.s32.totalorder %s21, 0
      %s248 = scalar_select %p247, %s21, 0
      %s249 = scalar_lea.vmem %s2, %s248
      %p250 = pneg %p111
      %p251 = pneg %p108
      %p252 = scmp.lt.s32.totalorder %s21, 0
      %s253 = scalar_select %p252, %s21, 0
      %s254 = scalar_lea.vmem %s3, %s253
      %p255 = pneg %p137
      %p256 = pneg %p134
      %p257 = pneg %p165
      %p258 = pneg %p162
      %s259 = smul.u32 32, %s20
      %p260 = scmp.lt.s32.totalorder %s259, 511
      %s261 = scalar_select %p260, %s259, 511
      %p262 = scmp.lt.s32.totalorder %s21, 0
      %s263 = scalar_select %p262, %s21, 0
      %s264 = sadd.s32 %s263, %s261
      %s265 = smul.addr %s264, 4
      %s266 = scalar_lea.vmem %s4, %s265
      %s267 = smul.u32 32, %s20
      %p268 = scmp.lt.s32.totalorder %s267, 511
      %s269 = scalar_select %p268, %s267, 511
      %p270 = scmp.lt.s32.totalorder %s22, 0
      %s271 = scalar_select %p270, %s22, 0
      %s272 = sadd.s32 %s271, %s269
      %s273 = smul.addr %s272, 4
      %s274 = scalar_lea.vmem %s0, %s273
      %s275 = smul.u32 32, %s20
      %s276 = smul.u32 16, %s22
      %p277 = scmp.lt.s32.totalorder %s276, 15
      %s278 = scalar_select %p277, %s276, 15
      %p279 = scmp.lt.s32.totalorder %s21, 0
      %s280 = scalar_select %p279, %s21, 0
      %s281 = sadd.s32 %s280, %s278
      %s282 = smul.addr %s281, 4
      %s283 = scalar_lea.vmem %s1, %s282
      %s284 = smul.u32 16, %s22
      %p285 = scmp.lt.s32.totalorder %s21, 0
      %s286 = scalar_select %p285, %s21, 0
      %s287 = scalar_lea.vmem %s2, %s286
      %p288 = scmp.lt.s32.totalorder %s21, 0
      %s289 = scalar_select %p288, %s21, 0
      %s290 = scalar_lea.vmem %s3, %s289
      %s291 = smul.u32 32, %s20
      %p292 = scmp.lt.s32.totalorder %s291, 511
      %s293 = scalar_select %p292, %s291, 511
      %p294 = scmp.lt.s32.totalorder %s21, 0
      %s295 = scalar_select %p294, %s21, 0
      %s296 = sadd.s32 %s295, %s293
      %s297 = smul.addr %s296, 4
      %s298 = scalar_lea.vmem %s4, %s297
      %s299 = smul.u32 32, %s20
      %p300 = scmp.eq.s32.totalorder %s22, 0
      // Predicated region
      $region37: #{stem_forward.3} parent=35 // pred_check
        %p301 = pneg %p300
      $region38: #{stem_forward.3} parent=35 // pred_check_branch
        %303 = sbr.rel (%p301) target = $region40
      $region39: #{stem_forward.3} parent=35 // pred_region
        %304 = vst [vmem:[#allocation2] sm:$0xff] 0.0
        %305 = vst [vmem:[#allocation2 + $0x8] sm:$0xff] 0.0
        %306 = vst [vmem:[#allocation2 + $0x10] sm:$0xff] 0.0
        %307 = vst [vmem:[#allocation2 + $0x18] sm:$0xff] 0.0
        %308 = vst [vmem:[#allocation2 + $0x20] sm:$0xff] 0.0
        %309 = vst [vmem:[#allocation2 + $0x28] sm:$0xff] 0.0
        %310 = vst [vmem:[#allocation2 + $0x30] sm:$0xff] 0.0
        %311 = vst [vmem:[#allocation2 + $0x38] sm:$0xff] 0.0
        %312 = vst [vmem:[#allocation2 + $0x40] sm:$0xff] 0.0
        %313 = vst [vmem:[#allocation2 + $0x48] sm:$0xff] 0.0
        %314 = vst [vmem:[#allocation2 + $0x50] sm:$0xff] 0.0
        %315 = vst [vmem:[#allocation2 + $0x58] sm:$0xff] 0.0
        %316 = vst [vmem:[#allocation2 + $0x60] sm:$0xff] 0.0
        %317 = vst [vmem:[#allocation2 + $0x68] sm:$0xff] 0.0
        %318 = vst [vmem:[#allocation2 + $0x70] sm:$0xff] 0.0
        %319 = vst [vmem:[#allocation2 + $0x78] sm:$0xff] 0.0
        %320 = vst [vmem:[#allocation2 + $0x80] sm:$0xff] 0.0
        %321 = vst [vmem:[#allocation2 + $0x88] sm:$0xff] 0.0
        %322 = vst [vmem:[#allocation2 + $0x90] sm:$0xff] 0.0
        %323 = vst [vmem:[#allocation2 + $0x98] sm:$0xff] 0.0
        %324 = vst [vmem:[#allocation2 + $0xa0] sm:$0xff] 0.0
        %325 = vst [vmem:[#allocation2 + $0xa8] sm:$0xff] 0.0
        %326 = vst [vmem:[#allocation2 + $0xb0] sm:$0xff] 0.0
        %327 = vst [vmem:[#allocation2 + $0xb8] sm:$0xff] 0.0
        %328 = vst [vmem:[#allocation2 + $0xc0] sm:$0xff] 0.0
        %329 = vst [vmem:[#allocation2 + $0xc8] sm:$0xff] 0.0
        %330 = vst [vmem:[#allocation2 + $0xd0] sm:$0xff] 0.0
        %331 = vst [vmem:[#allocation2 + $0xd8] sm:$0xff] 0.0
        %332 = vst [vmem:[#allocation2 + $0xe0] sm:$0xff] 0.0
        %333 = vst [vmem:[#allocation2 + $0xe8] sm:$0xff] 0.0
        %334 = vst [vmem:[#allocation2 + $0xf0] sm:$0xff] 0.0
        %335 = vst [vmem:[#allocation2 + $0xf8] sm:$0xff] 0.0
      $region40: #{stem_forward.3} parent=35 // pred_fallthru
        _
      %v336 = vld [vmem:[#allocation2] sm:$0xff]
      %v337 = vld [vmem:[#allocation2 + $0x8] sm:$0xff]
      %v338 = vld [vmem:[#allocation2 + $0x10] sm:$0xff]
      %v339 = vld [vmem:[#allocation2 + $0x18] sm:$0xff]
      %v340 = vld [vmem:[#allocation2 + $0x20] sm:$0xff]
      %v341 = vld [vmem:[#allocation2 + $0x28] sm:$0xff]
      %v342 = vld [vmem:[#allocation2 + $0x30] sm:$0xff]
      %v343 = vld [vmem:[#allocation2 + $0x38] sm:$0xff]
      %v344 = vld [vmem:[#allocation2 + $0x40] sm:$0xff]
      %v345 = vld [vmem:[#allocation2 + $0x48] sm:$0xff]
      %v346 = vld [vmem:[#allocation2 + $0x50] sm:$0xff]
      %v347 = vld [vmem:[#allocation2 + $0x58] sm:$0xff]
      %v348 = vld [vmem:[#allocation2 + $0x60] sm:$0xff]
      %v349 = vld [vmem:[#allocation2 + $0x68] sm:$0xff]
      %v350 = vld [vmem:[#allocation2 + $0x70] sm:$0xff]
      %v351 = vld [vmem:[#allocation2 + $0x78] sm:$0xff]
      %v352 = vld [vmem:[#allocation2 + $0x80] sm:$0xff]
      %v353 = vld [vmem:[#allocation2 + $0x88] sm:$0xff]
      %v354 = vld [vmem:[#allocation2 + $0x90] sm:$0xff]
      %v355 = vld [vmem:[#allocation2 + $0x98] sm:$0xff]
      %v356 = vld [vmem:[#allocation2 + $0xa0] sm:$0xff]
      %v357 = vld [vmem:[#allocation2 + $0xa8] sm:$0xff]
      %v358 = vld [vmem:[#allocation2 + $0xb0] sm:$0xff]
      %v359 = vld [vmem:[#allocation2 + $0xb8] sm:$0xff]
      %v360 = vld [vmem:[#allocation2 + $0xc0] sm:$0xff]
      %v361 = vld [vmem:[#allocation2 + $0xc8] sm:$0xff]
      %v362 = vld [vmem:[#allocation2 + $0xd0] sm:$0xff]
      %v363 = vld [vmem:[#allocation2 + $0xd8] sm:$0xff]
      %v364 = vld [vmem:[#allocation2 + $0xe0] sm:$0xff]
      %v365 = vld [vmem:[#allocation2 + $0xe8] sm:$0xff]
      %v366 = vld [vmem:[#allocation2 + $0xf0] sm:$0xff]
      %v367 = vld [vmem:[#allocation2 + $0xf8] sm:$0xff]
      %v368 = vld [vmem:[%s274] sm:$0xf]
      %v369 = vld [vmem:[%s274 + $0x4] sm:$0xf]
      %v370 = vld [vmem:[%s274 + $0x8] sm:$0xf]
      %v371 = vld [vmem:[%s274 + $0xc] sm:$0xf]
      %v372 = vld [vmem:[%s274 + $0x10] sm:$0xf]
      %v373 = vld [vmem:[%s274 + $0x14] sm:$0xf]
      %v374 = vld [vmem:[%s274 + $0x18] sm:$0xf]
      %v375 = vld [vmem:[%s274 + $0x1c] sm:$0xf]
      %v376 = vld [vmem:[%s274 + $0x20] sm:$0xf]
      %v377 = vld [vmem:[%s274 + $0x24] sm:$0xf]
      %v378 = vld [vmem:[%s274 + $0x28] sm:$0xf]
      %v379 = vld [vmem:[%s274 + $0x2c] sm:$0xf]
      %v380 = vld [vmem:[%s274 + $0x30] sm:$0xf]
      %v381 = vld [vmem:[%s274 + $0x34] sm:$0xf]
      %v382 = vld [vmem:[%s274 + $0x38] sm:$0xf]
      %v383 = vld [vmem:[%s274 + $0x3c] sm:$0xf]
      %v384 = vld [vmem:[%s274 + $0x40] sm:$0xf]
      %v385 = vld [vmem:[%s274 + $0x44] sm:$0xf]
      %v386 = vld [vmem:[%s274 + $0x48] sm:$0xf]
      %v387 = vld [vmem:[%s274 + $0x4c] sm:$0xf]
      %v388 = vld [vmem:[%s274 + $0x50] sm:$0xf]
      %v389 = vld [vmem:[%s274 + $0x54] sm:$0xf]
      %v390 = vld [vmem:[%s274 + $0x58] sm:$0xf]
      %v391 = vld [vmem:[%s274 + $0x5c] sm:$0xf]
      %v392 = vld [vmem:[%s274 + $0x60] sm:$0xf]
      %v393 = vld [vmem:[%s274 + $0x64] sm:$0xf]
      %v394 = vld [vmem:[%s274 + $0x68] sm:$0xf]
      %v395 = vld [vmem:[%s274 + $0x6c] sm:$0xf]
      %v396 = vld [vmem:[%s274 + $0x70] sm:$0xf]
      %v397 = vld [vmem:[%s274 + $0x74] sm:$0xf]
      %v398 = vld [vmem:[%s274 + $0x78] sm:$0xf]
      %v399 = vld [vmem:[%s274 + $0x7c] sm:$0xf]
      %v400 = vld [vmem:[%s283] sm:$0xf]
      %v401 = vld [vmem:[%s283 + $0x4] sm:$0xf]
      %v402 = vld [vmem:[%s283 + $0x8] sm:$0xf]
      %v403 = vld [vmem:[%s283 + $0xc] sm:$0xf]
      %v404 = vld [vmem:[%s283 + $0x10] sm:$0xf]
      %v405 = vld [vmem:[%s283 + $0x14] sm:$0xf]
      %v406 = vld [vmem:[%s283 + $0x18] sm:$0xf]
      %v407 = vld [vmem:[%s283 + $0x1c] sm:$0xf]
      %v408 = vld [vmem:[%s283 + $0x20] sm:$0xf]
      %v409 = vld [vmem:[%s283 + $0x24] sm:$0xf]
      %v410 = vld [vmem:[%s283 + $0x28] sm:$0xf]
      %v411 = vld [vmem:[%s283 + $0x2c] sm:$0xf]
      %v412 = vld [vmem:[%s283 + $0x30] sm:$0xf]
      %v413 = vld [vmem:[%s283 + $0x34] sm:$0xf]
      %v414 = vld [vmem:[%s283 + $0x38] sm:$0xf]
      %v415 = vld [vmem:[%s283 + $0x3c] sm:$0xf]
      %v448 = vunpack.c.l.b16 %v368
      %v449 = vunpack.c.l.b16 %v369
      %v450 = vunpack.c.l.b16 %v370
      %v451 = vunpack.c.l.b16 %v371
      %v452 = vunpack.c.l.b16 %v372
      %v453 = vunpack.c.l.b16 %v373
      %v454 = vunpack.c.l.b16 %v374
      %v455 = vunpack.c.l.b16 %v375
      %v456 = vunpack.c.l.b16 %v376
      %v457 = vunpack.c.l.b16 %v377
      %v458 = vunpack.c.l.b16 %v378
      %v459 = vunpack.c.l.b16 %v379
      %v460 = vunpack.c.l.b16 %v380
      %v461 = vunpack.c.l.b16 %v381
      %v462 = vunpack.c.l.b16 %v382
      %v463 = vunpack.c.l.b16 %v383
      %v464 = vunpack.c.l.b16 %v384
      %v465 = vunpack.c.l.b16 %v385
      %v466 = vunpack.c.l.b16 %v386
      %v467 = vunpack.c.l.b16 %v387
      %v468 = vunpack.c.l.b16 %v388
      %v469 = vunpack.c.l.b16 %v389
      %v470 = vunpack.c.l.b16 %v390
      %v471 = vunpack.c.l.b16 %v391
      %v472 = vunpack.c.l.b16 %v392
      %v473 = vunpack.c.l.b16 %v393
      %v474 = vunpack.c.l.b16 %v394
      %v475 = vunpack.c.l.b16 %v395
      %v476 = vunpack.c.l.b16 %v396
      %v477 = vunpack.c.l.b16 %v397
      %v478 = vunpack.c.l.b16 %v398
      %v479 = vunpack.c.l.b16 %v399
      %v480 = vpack.c.b16 %v449, %v448
      %v481 = vpack.c.b16 %v451, %v450
      %v482 = vpack.c.b16 %v453, %v452
      %v483 = vpack.c.b16 %v455, %v454
      %v484 = vpack.c.b16 %v457, %v456
      %v485 = vpack.c.b16 %v459, %v458
      %v486 = vpack.c.b16 %v461, %v460
      %v487 = vpack.c.b16 %v463, %v462
      %v488 = vpack.c.b16 %v465, %v464
      %v489 = vpack.c.b16 %v467, %v466
      %v490 = vpack.c.b16 %v469, %v468
      %v491 = vpack.c.b16 %v471, %v470
      %v492 = vpack.c.b16 %v473, %v472
      %v493 = vpack.c.b16 %v475, %v474
      %v494 = vpack.c.b16 %v477, %v476
      %v495 = vpack.c.b16 %v479, %v478
      %v528 = vunpack.c.l.b16 %v400
      %v529 = vunpack.c.l.b16 %v401
      %v530 = vunpack.c.l.b16 %v402
      %v531 = vunpack.c.l.b16 %v403
      %v532 = vunpack.c.l.b16 %v404
      %v533 = vunpack.c.l.b16 %v405
      %v534 = vunpack.c.l.b16 %v406
      %v535 = vunpack.c.l.b16 %v407
      %v536 = vunpack.c.l.b16 %v408
      %v537 = vunpack.c.l.b16 %v409
      %v538 = vunpack.c.l.b16 %v410
      %v539 = vunpack.c.l.b16 %v411
      %v540 = vunpack.c.l.b16 %v412
      %v541 = vunpack.c.l.b16 %v413
      %v542 = vunpack.c.l.b16 %v414
      %v543 = vunpack.c.l.b16 %v415
      %v544 = vpack.c.b16 %v529, %v528
      %v545 = vpack.c.b16 %v531, %v530
      %v546 = vpack.c.b16 %v533, %v532
      %v547 = vpack.c.b16 %v535, %v534
      %v548 = vpack.c.b16 %v537, %v536
      %v549 = vpack.c.b16 %v539, %v538
      %v550 = vpack.c.b16 %v541, %v540
      %v551 = vpack.c.b16 %v543, %v542
      %560 = vmatpush.bf16.msra.mxu0 %v551
      %561 = vmatpush.bf16.msra.mxu0 %v550
      %562 = vmatpush.bf16.msra.mxu0 %v549
      %563 = vmatpush.bf16.msra.mxu0 %v548
      %564 = vmatpush.bf16.msra.mxu0 %v547
      %565 = vmatpush.bf16.msra.mxu0 %v546
      %566 = vmatpush.bf16.msra.mxu0 %v545
      %567 = vmatpush.bf16.msra.mxu0 %v544
      %568 = vmatmul.bf16.gmra.mxu0 %v480
      %v569 = vpop.f32.mrf.mxu0
      %v570 = vadd.f32 0.0, %v569
      %v571 = vpop.f32.mrf.mxu0
      %v572 = vadd.f32 0.0, %v571
      %573 = vmatmul.bf16.gmra.mxu0 %v481
      %v574 = vpop.f32.mrf.mxu0
      %v575 = vadd.f32 0.0, %v574
      %v576 = vpop.f32.mrf.mxu0
      %v577 = vadd.f32 0.0, %v576
      %578 = vmatmul.bf16.gmra.mxu0 %v482
      %v579 = vpop.f32.mrf.mxu0
      %v580 = vadd.f32 0.0, %v579
      %v581 = vpop.f32.mrf.mxu0
      %v582 = vadd.f32 0.0, %v581
      %583 = vmatmul.bf16.gmra.mxu0 %v483
      %v584 = vpop.f32.mrf.mxu0
      %v585 = vadd.f32 0.0, %v584
      %v586 = vpop.f32.mrf.mxu0
      %v587 = vadd.f32 0.0, %v586
      %588 = vmatmul.bf16.gmra.mxu0 %v484
      %v589 = vpop.f32.mrf.mxu0
      %v590 = vadd.f32 0.0, %v589
      %v591 = vpop.f32.mrf.mxu0
      %v592 = vadd.f32 0.0, %v591
      %593 = vmatmul.bf16.gmra.mxu0 %v485
      %v594 = vpop.f32.mrf.mxu0
      %v595 = vadd.f32 0.0, %v594
      %v596 = vpop.f32.mrf.mxu0
      %v597 = vadd.f32 0.0, %v596
      %598 = vmatmul.bf16.gmra.mxu0 %v486
      %v599 = vpop.f32.mrf.mxu0
      %v600 = vadd.f32 0.0, %v599
      %v601 = vpop.f32.mrf.mxu0
      %v602 = vadd.f32 0.0, %v601
      %603 = vmatmul.bf16.gmra.mxu0 %v487
      %v604 = vpop.f32.mrf.mxu0
      %v605 = vadd.f32 0.0, %v604
      %v606 = vpop.f32.mrf.mxu0
      %v607 = vadd.f32 0.0, %v606
      %608 = vmatmul.bf16.gmra.mxu0 %v488
      %v609 = vpop.f32.mrf.mxu0
      %v610 = vadd.f32 0.0, %v609
      %v611 = vpop.f32.mrf.mxu0
      %v612 = vadd.f32 0.0, %v611
      %613 = vmatmul.bf16.gmra.mxu0 %v489
      %v614 = vpop.f32.mrf.mxu0
      %v615 = vadd.f32 0.0, %v614
      %v616 = vpop.f32.mrf.mxu0
      %v617 = vadd.f32 0.0, %v616
      %618 = vmatmul.bf16.gmra.mxu0 %v490
      %v619 = vpop.f32.mrf.mxu0
      %v620 = vadd.f32 0.0, %v619
      %v621 = vpop.f32.mrf.mxu0
      %v622 = vadd.f32 0.0, %v621
      %623 = vmatmul.bf16.gmra.mxu0 %v491
      %v624 = vpop.f32.mrf.mxu0
      %v625 = vadd.f32 0.0, %v624
      %v626 = vpop.f32.mrf.mxu0
      %v627 = vadd.f32 0.0, %v626
      %628 = vmatmul.bf16.gmra.mxu0 %v492
      %v629 = vpop.f32.mrf.mxu0
      %v630 = vadd.f32 0.0, %v629
      %v631 = vpop.f32.mrf.mxu0
      %v632 = vadd.f32 0.0, %v631
      %633 = vmatmul.bf16.gmra.mxu0 %v493
      %v634 = vpop.f32.mrf.mxu0
      %v635 = vadd.f32 0.0, %v634
      %v636 = vpop.f32.mrf.mxu0
      %v637 = vadd.f32 0.0, %v636
      %638 = vmatmul.bf16.gmra.mxu0 %v494
      %v639 = vpop.f32.mrf.mxu0
      %v640 = vadd.f32 0.0, %v639
      %v641 = vpop.f32.mrf.mxu0
      %v642 = vadd.f32 0.0, %v641
      %643 = vmatmul.bf16.gmra.mxu0 %v495
      %v644 = vpop.f32.mrf.mxu0
      %v645 = vadd.f32 0.0, %v644
      %v646 = vpop.f32.mrf.mxu0
      %v647 = vadd.f32 0.0, %v646
      %648 = vdwg.mxu0
      %v649 = vadd.f32 %v336, %v570
      %v650 = vadd.f32 %v337, %v572
      %v651 = vadd.f32 %v338, %v575
      %v652 = vadd.f32 %v339, %v577
      %v653 = vadd.f32 %v340, %v580
      %v654 = vadd.f32 %v341, %v582
      %v655 = vadd.f32 %v342, %v585
      %v656 = vadd.f32 %v343, %v587
      %v657 = vadd.f32 %v344, %v590
      %v658 = vadd.f32 %v345, %v592
      %v659 = vadd.f32 %v346, %v595
      %v660 = vadd.f32 %v347, %v597
      %v661 = vadd.f32 %v348, %v600
      %v662 = vadd.f32 %v349, %v602
      %v663 = vadd.f32 %v350, %v605
      %v664 = vadd.f32 %v351, %v607
      %v665 = vadd.f32 %v352, %v610
      %v666 = vadd.f32 %v353, %v612
      %v667 = vadd.f32 %v354, %v615
      %v668 = vadd.f32 %v355, %v617
      %v669 = vadd.f32 %v356, %v620
      %v670 = vadd.f32 %v357, %v622
      %v671 = vadd.f32 %v358, %v625
      %v672 = vadd.f32 %v359, %v627
      %v673 = vadd.f32 %v360, %v630
      %v674 = vadd.f32 %v361, %v632
      %v675 = vadd.f32 %v362, %v635
      %v676 = vadd.f32 %v363, %v637
      %v677 = vadd.f32 %v364, %v640
      %v678 = vadd.f32 %v365, %v642
      %v679 = vadd.f32 %v366, %v645
      %v680 = vadd.f32 %v367, %v647
      %681 = vst [vmem:[#allocation2] sm:$0xff] %v649
      %682 = vst [vmem:[#allocation2 + $0x8] sm:$0xff] %v650
      %683 = vst [vmem:[#allocation2 + $0x10] sm:$0xff] %v651
      %684 = vst [vmem:[#allocation2 + $0x18] sm:$0xff] %v652
      %685 = vst [vmem:[#allocation2 + $0x20] sm:$0xff] %v653
      %686 = vst [vmem:[#allocation2 + $0x28] sm:$0xff] %v654
      %687 = vst [vmem:[#allocation2 + $0x30] sm:$0xff] %v655
      %688 = vst [vmem:[#allocation2 + $0x38] sm:$0xff] %v656
      %689 = vst [vmem:[#allocation2 + $0x40] sm:$0xff] %v657
      %690 = vst [vmem:[#allocation2 + $0x48] sm:$0xff] %v658
      %691 = vst [vmem:[#allocation2 + $0x50] sm:$0xff] %v659
      %692 = vst [vmem:[#allocation2 + $0x58] sm:$0xff] %v660
      %693 = vst [vmem:[#allocation2 + $0x60] sm:$0xff] %v661
      %694 = vst [vmem:[#allocation2 + $0x68] sm:$0xff] %v662
      %695 = vst [vmem:[#allocation2 + $0x70] sm:$0xff] %v663
      %696 = vst [vmem:[#allocation2 + $0x78] sm:$0xff] %v664
      %697 = vst [vmem:[#allocation2 + $0x80] sm:$0xff] %v665
      %698 = vst [vmem:[#allocation2 + $0x88] sm:$0xff] %v666
      %699 = vst [vmem:[#allocation2 + $0x90] sm:$0xff] %v667
      %700 = vst [vmem:[#allocation2 + $0x98] sm:$0xff] %v668
      %701 = vst [vmem:[#allocation2 + $0xa0] sm:$0xff] %v669
      %702 = vst [vmem:[#allocation2 + $0xa8] sm:$0xff] %v670
      %703 = vst [vmem:[#allocation2 + $0xb0] sm:$0xff] %v671
      %704 = vst [vmem:[#allocation2 + $0xb8] sm:$0xff] %v672
      %705 = vst [vmem:[#allocation2 + $0xc0] sm:$0xff] %v673
      %706 = vst [vmem:[#allocation2 + $0xc8] sm:$0xff] %v674
      %707 = vst [vmem:[#allocation2 + $0xd0] sm:$0xff] %v675
      %708 = vst [vmem:[#allocation2 + $0xd8] sm:$0xff] %v676
      %709 = vst [vmem:[#allocation2 + $0xe0] sm:$0xff] %v677
      %710 = vst [vmem:[#allocation2 + $0xe8] sm:$0xff] %v678
      %711 = vst [vmem:[#allocation2 + $0xf0] sm:$0xff] %v679
      %712 = vst [vmem:[#allocation2 + $0xf8] sm:$0xff] %v680
      // Predicated region
      $region41: #{stem_forward.3} parent=35 // pred_check
        %p713 = pneg %p300
      $region42: #{stem_forward.3} parent=35 // pred_check_branch
        %715 = sbr.rel (%p713) target = $region44
      $region43: #{stem_forward.3} parent=35 // pred_region
        %v716 = vld [vmem:[#allocation2] sm:$0xff]
        %v717 = vld [vmem:[#allocation2 + $0x8] sm:$0xff]
        %v718 = vld [vmem:[#allocation2 + $0x10] sm:$0xff]
        %v719 = vld [vmem:[#allocation2 + $0x18] sm:$0xff]
        %v720 = vld [vmem:[#allocation2 + $0x20] sm:$0xff]
        %v721 = vld [vmem:[#allocation2 + $0x28] sm:$0xff]
        %v722 = vld [vmem:[#allocation2 + $0x30] sm:$0xff]
        %v723 = vld [vmem:[#allocation2 + $0x38] sm:$0xff]
        %v724 = vld [vmem:[#allocation2 + $0x40] sm:$0xff]
        %v725 = vld [vmem:[#allocation2 + $0x48] sm:$0xff]
        %v726 = vld [vmem:[#allocation2 + $0x50] sm:$0xff]
        %v727 = vld [vmem:[#allocation2 + $0x58] sm:$0xff]
        %v728 = vld [vmem:[#allocation2 + $0x60] sm:$0xff]
        %v729 = vld [vmem:[#allocation2 + $0x68] sm:$0xff]
        %v730 = vld [vmem:[#allocation2 + $0x70] sm:$0xff]
        %v731 = vld [vmem:[#allocation2 + $0x78] sm:$0xff]
        %v732 = vld [vmem:[#allocation2 + $0x80] sm:$0xff]
        %v733 = vld [vmem:[#allocation2 + $0x88] sm:$0xff]
        %v734 = vld [vmem:[#allocation2 + $0x90] sm:$0xff]
        %v735 = vld [vmem:[#allocation2 + $0x98] sm:$0xff]
        %v736 = vld [vmem:[#allocation2 + $0xa0] sm:$0xff]
        %v737 = vld [vmem:[#allocation2 + $0xa8] sm:$0xff]
        %v738 = vld [vmem:[#allocation2 + $0xb0] sm:$0xff]
        %v739 = vld [vmem:[#allocation2 + $0xb8] sm:$0xff]
        %v740 = vld [vmem:[#allocation2 + $0xc0] sm:$0xff]
        %v741 = vld [vmem:[#allocation2 + $0xc8] sm:$0xff]
        %v742 = vld [vmem:[#allocation2 + $0xd0] sm:$0xff]
        %v743 = vld [vmem:[#allocation2 + $0xd8] sm:$0xff]
        %v744 = vld [vmem:[#allocation2 + $0xe0] sm:$0xff]
        %v745 = vld [vmem:[#allocation2 + $0xe8] sm:$0xff]
        %v746 = vld [vmem:[#allocation2 + $0xf0] sm:$0xff]
        %v747 = vld [vmem:[#allocation2 + $0xf8] sm:$0xff]
        %v748 = vld [vmem:[%s287] sm:$0x1]
        %v750 = vperm.slane %v748, 0
        %v752 = vmul.f32 %v716, %v750
        %v753 = vmul.f32 %v717, %v750
        %v754 = vmul.f32 %v718, %v750
        %v755 = vmul.f32 %v719, %v750
        %v756 = vmul.f32 %v720, %v750
        %v757 = vmul.f32 %v721, %v750
        %v758 = vmul.f32 %v722, %v750
        %v759 = vmul.f32 %v723, %v750
        %v760 = vmul.f32 %v724, %v750
        %v761 = vmul.f32 %v725, %v750
        %v762 = vmul.f32 %v726, %v750
        %v763 = vmul.f32 %v727, %v750
        %v764 = vmul.f32 %v728, %v750
        %v765 = vmul.f32 %v729, %v750
        %v766 = vmul.f32 %v730, %v750
        %v767 = vmul.f32 %v731, %v750
        %v768 = vmul.f32 %v732, %v750
        %v769 = vmul.f32 %v733, %v750
        %v770 = vmul.f32 %v734, %v750
        %v771 = vmul.f32 %v735, %v750
        %v772 = vmul.f32 %v736, %v750
        %v773 = vmul.f32 %v737, %v750
        %v774 = vmul.f32 %v738, %v750
        %v775 = vmul.f32 %v739, %v750
        %v776 = vmul.f32 %v740, %v750
        %v777 = vmul.f32 %v741, %v750
        %v778 = vmul.f32 %v742, %v750
        %v779 = vmul.f32 %v743, %v750
        %v780 = vmul.f32 %v744, %v750
        %v781 = vmul.f32 %v745, %v750
        %v782 = vmul.f32 %v746, %v750
        %v783 = vmul.f32 %v747, %v750
        %v784 = vld [vmem:[%s290] sm:$0x1]
        %v786 = vperm.slane %v784, 0
        %v788 = vadd.f32 %v752, %v786
        %v789 = vadd.f32 %v753, %v786
        %v790 = vadd.f32 %v754, %v786
        %v791 = vadd.f32 %v755, %v786
        %v792 = vadd.f32 %v756, %v786
        %v793 = vadd.f32 %v757, %v786
        %v794 = vadd.f32 %v758, %v786
        %v795 = vadd.f32 %v759, %v786
        %v796 = vadd.f32 %v760, %v786
        %v797 = vadd.f32 %v761, %v786
        %v798 = vadd.f32 %v762, %v786
        %v799 = vadd.f32 %v763, %v786
        %v800 = vadd.f32 %v764, %v786
        %v801 = vadd.f32 %v765, %v786
        %v802 = vadd.f32 %v766, %v786
        %v803 = vadd.f32 %v767, %v786
        %v804 = vadd.f32 %v768, %v786
        %v805 = vadd.f32 %v769, %v786
        %v806 = vadd.f32 %v770, %v786
        %v807 = vadd.f32 %v771, %v786
        %v808 = vadd.f32 %v772, %v786
        %v809 = vadd.f32 %v773, %v786
        %v810 = vadd.f32 %v774, %v786
        %v811 = vadd.f32 %v775, %v786
        %v812 = vadd.f32 %v776, %v786
        %v813 = vadd.f32 %v777, %v786
        %v814 = vadd.f32 %v778, %v786
        %v815 = vadd.f32 %v779, %v786
        %v816 = vadd.f32 %v780, %v786
        %v817 = vadd.f32 %v781, %v786
        %v818 = vadd.f32 %v782, %v786
        %v819 = vadd.f32 %v783, %v786
        %v820 = vmax.f32 %v788, 0.0
        %v821 = vmax.f32 %v789, 0.0
        %v822 = vmax.f32 %v790, 0.0
        %v823 = vmax.f32 %v791, 0.0
        %v824 = vmax.f32 %v792, 0.0
        %v825 = vmax.f32 %v793, 0.0
        %v826 = vmax.f32 %v794, 0.0
        %v827 = vmax.f32 %v795, 0.0
        %v828 = vmax.f32 %v796, 0.0
        %v829 = vmax.f32 %v797, 0.0
        %v830 = vmax.f32 %v798, 0.0
        %v831 = vmax.f32 %v799, 0.0
        %v832 = vmax.f32 %v800, 0.0
        %v833 = vmax.f32 %v801, 0.0
        %v834 = vmax.f32 %v802, 0.0
        %v835 = vmax.f32 %v803, 0.0
        %v836 = vmax.f32 %v804, 0.0
        %v837 = vmax.f32 %v805, 0.0
        %v838 = vmax.f32 %v806, 0.0
        %v839 = vmax.f32 %v807, 0.0
        %v840 = vmax.f32 %v808, 0.0
        %v841 = vmax.f32 %v809, 0.0
        %v842 = vmax.f32 %v810, 0.0
        %v843 = vmax.f32 %v811, 0.0
        %v844 = vmax.f32 %v812, 0.0
        %v845 = vmax.f32 %v813, 0.0
        %v846 = vmax.f32 %v814, 0.0
        %v847 = vmax.f32 %v815, 0.0
        %v848 = vmax.f32 %v816, 0.0
        %v849 = vmax.f32 %v817, 0.0
        %v850 = vmax.f32 %v818, 0.0
        %v851 = vmax.f32 %v819, 0.0
        %v852 = vpack.c.bf16 %v820, %v820
        %v853 = vpack.c.bf16 %v821, %v821
        %v854 = vpack.c.bf16 %v822, %v822
        %v855 = vpack.c.bf16 %v823, %v823
        %v856 = vpack.c.bf16 %v824, %v824
        %v857 = vpack.c.bf16 %v825, %v825
        %v858 = vpack.c.bf16 %v826, %v826
        %v859 = vpack.c.bf16 %v827, %v827
        %v860 = vpack.c.bf16 %v828, %v828
        %v861 = vpack.c.bf16 %v829, %v829
        %v862 = vpack.c.bf16 %v830, %v830
        %v863 = vpack.c.bf16 %v831, %v831
        %v864 = vpack.c.bf16 %v832, %v832
        %v865 = vpack.c.bf16 %v833, %v833
        %v866 = vpack.c.bf16 %v834, %v834
        %v867 = vpack.c.bf16 %v835, %v835
        %v868 = vpack.c.bf16 %v836, %v836
        %v869 = vpack.c.bf16 %v837, %v837
        %v870 = vpack.c.bf16 %v838, %v838
        %v871 = vpack.c.bf16 %v839, %v839
        %v872 = vpack.c.bf16 %v840, %v840
        %v873 = vpack.c.bf16 %v841, %v841
        %v874 = vpack.c.bf16 %v842, %v842
        %v875 = vpack.c.bf16 %v843, %v843
        %v876 = vpack.c.bf16 %v844, %v844
        %v877 = vpack.c.bf16 %v845, %v845
        %v878 = vpack.c.bf16 %v846, %v846
        %v879 = vpack.c.bf16 %v847, %v847
        %v880 = vpack.c.bf16 %v848, %v848
        %v881 = vpack.c.bf16 %v849, %v849
        %v882 = vpack.c.bf16 %v850, %v850
        %v883 = vpack.c.bf16 %v851, %v851
        %884 = vst [vmem:[%s298] sm:$0xf] %v852
        %885 = vst [vmem:[%s298 + $0x4] sm:$0xf] %v853
        %886 = vst [vmem:[%s298 + $0x8] sm:$0xf] %v854
        %887 = vst [vmem:[%s298 + $0xc] sm:$0xf] %v855
        %888 = vst [vmem:[%s298 + $0x10] sm:$0xf] %v856
        %889 = vst [vmem:[%s298 + $0x14] sm:$0xf] %v857
        %890 = vst [vmem:[%s298 + $0x18] sm:$0xf] %v858
        %891 = vst [vmem:[%s298 + $0x1c] sm:$0xf] %v859
        %892 = vst [vmem:[%s298 + $0x20] sm:$0xf] %v860
        %893 = vst [vmem:[%s298 + $0x24] sm:$0xf] %v861
        %894 = vst [vmem:[%s298 + $0x28] sm:$0xf] %v862
        %895 = vst [vmem:[%s298 + $0x2c] sm:$0xf] %v863
        %896 = vst [vmem:[%s298 + $0x30] sm:$0xf] %v864
        %897 = vst [vmem:[%s298 + $0x34] sm:$0xf] %v865
        %898 = vst [vmem:[%s298 + $0x38] sm:$0xf] %v866
        %899 = vst [vmem:[%s298 + $0x3c] sm:$0xf] %v867
        %900 = vst [vmem:[%s298 + $0x40] sm:$0xf] %v868
        %901 = vst [vmem:[%s298 + $0x44] sm:$0xf] %v869
        %902 = vst [vmem:[%s298 + $0x48] sm:$0xf] %v870
        %903 = vst [vmem:[%s298 + $0x4c] sm:$0xf] %v871
        %904 = vst [vmem:[%s298 + $0x50] sm:$0xf] %v872
        %905 = vst [vmem:[%s298 + $0x54] sm:$0xf] %v873
        %906 = vst [vmem:[%s298 + $0x58] sm:$0xf] %v874
        %907 = vst [vmem:[%s298 + $0x5c] sm:$0xf] %v875
        %908 = vst [vmem:[%s298 + $0x60] sm:$0xf] %v876
        %909 = vst [vmem:[%s298 + $0x64] sm:$0xf] %v877
        %910 = vst [vmem:[%s298 + $0x68] sm:$0xf] %v878
        %911 = vst [vmem:[%s298 + $0x6c] sm:$0xf] %v879
        %912 = vst [vmem:[%s298 + $0x70] sm:$0xf] %v880
        %913 = vst [vmem:[%s298 + $0x74] sm:$0xf] %v881
        %914 = vst [vmem:[%s298 + $0x78] sm:$0xf] %v882
        %915 = vst [vmem:[%s298 + $0x7c] sm:$0xf] %v883
      $region44: #{stem_forward.3} parent=35 // pred_fallthru
        _
      %s916 = smul.u32 32, %s20
      %p917 = scmp.lt.s32.totalorder %s916, 511
      %s918 = scalar_select %p917, %s916, 511
      %p919 = scmp.lt.s32.totalorder %s21, 0
      %s920 = scalar_select %p919, %s21, 0
      %s921 = sadd.s32 %s920, %s918
      %s922 = smul.addr %s921, 4
      %s923 = scalar_lea.vmem %s4, %s922
      // Predicated region
      $region45: #{stem_forward.3} parent=35 // pred_check
        %p924 = pneg %p162
      $region46: #{stem_forward.3} parent=35 // pred_check_branch
        %926 = sbr.rel (%p924) target = $region48
      $region47: #{stem_forward.3} parent=35 // pred_region
        %s927 = smul.u32 32, %s20
      $region48: #{stem_forward.3} parent=35 // pred_fallthru
        _
    $region36: #{stem_forward.3} parent=5 // pred_fallthru
      _
    %p928 = scmp.le.s32.totalorder 2, %s10
    // Predicated region
    $region49: #{stem_forward.3} parent=5 // pred_check
      %p929 = pneg %p928
    $region50: #{stem_forward.3} parent=5 // pred_check_branch
      %931 = sbr.rel (%p929) target = $region52
    $region51: #{stem_forward.3} parent=5 // pred_region
      %s932 = ssub.s32 %s10, 2
      // Predicated region
      $region53: #{stem_forward.3} parent=51 // pred_check
        %p933 = pneg %p168
      $region54: #{stem_forward.3} parent=51 // pred_check_branch
        %935 = sbr.rel (%p933) target = $region56
      $region55: #{stem_forward.3} parent=51 // pred_region
        %s936 = smul.u32 32, %s23
        %p937 = scmp.lt.s32.totalorder %s936, 511
        %s938 = scalar_select %p937, %s936, 511
        %p939 = scmp.lt.s32.totalorder %s24, 0
        %s940 = scalar_select %p939, %s24, 0
        %s941 = sadd.s32 %s940, %s938
        %s942 = smul.addr %s941, 4
        %s943 = scalar_lea.vmem %s4, %s942
      $region56: #{stem_forward.3} parent=51 // pred_fallthru
        _
    $region52: #{stem_forward.3} parent=5 // pred_fallthru
      _
  $region6: #{stem_forward.3} parent=0 // loop_footer
    %s14 = sadd.s32 1, %s10
  $region7: #{stem_forward.3} parent=0 // loop_footer_branch
    %9 = sbr.rel target = $region3
  $region8: #{stem_forward.3} parent=0 // loop_exit
    _

// kernel: stem_forward.4
$region0: #{stem_forward.4}
  #allocation0 [shape = 'u32[]', space=smem, size = 0x4, offset = 0x4, fixed_abs, tag = 'smem constant byte address 0x4 - core index']
  #allocation1 [shape = 'u32[72,128]{1,0:T(1,128)}', space=vmem, size = 0x9000, scoped, tag = 'internal scratch']
  #allocation2 [shape = 'f32[256,128]{1,0:T(8,128)}', space=vmem, size = 0x20000, scoped, tag = 'scratch operand']
  %s0 = inlined_call_operand.vmem [shape: bf16[4096,640], index: 0, kind: input, shape index: {}]
  %s1 = inlined_call_operand.vmem [shape: bf16[640,128], index: 1, kind: input, shape index: {}]
  %s2 = inlined_call_operand.vmem [shape: f32[1,128], index: 2, kind: input, shape index: {}]
  %s3 = inlined_call_operand.vmem [shape: f32[1,128], index: 3, kind: input, shape index: {}]
  %s4 = inlined_call_operand.vmem [shape: bf16[4096,128], index: 4, kind: output, shape index: {}]
  %s5 = sld [smem:[#allocation0]]
  $region57: #{stem_forward.4} parent=0
    _
  %s7 = ssub.s32 1, %s5
  %s8 = scalar_select 0, %s7, %s5
  loop: start=0, step=1, limit=18
  $region2: #{stem_forward.4} parent=0 // loop_pre_header
    _
  $region3: #{stem_forward.4} parent=0 // loop_header
    %s10 = sphi 0, %s14
    %p11 = scmp.ge.s32.totalorder %s10, 18
    %s17 = sphi 0, %s36
    %s18 = sphi 0, %s32
    %s19 = sphi 0, %s28
    %s20 = sphi 0, %s17
    %s21 = sphi 0, %s18
    %s22 = sphi 0, %s19
    %s23 = sphi 0, %s20
    %s24 = sphi 0, %s21
    %s25 = sphi 0, %s22
    %s41 = sphi 0, %s43
    %s44 = sphi 0, %s41
    %s45 = sphi 0, %s44
    %s61 = sphi 0, %s45
    %s69 = sphi 0, %s71
    %s72 = sphi 0, %s69
    %s73 = sphi 0, %s72
    %s89 = sphi 0, %s73
    %s95 = sphi 0, %s97
    %s98 = sphi 0, %s95
    %s99 = sphi 0, %s98
    %s115 = sphi 0, %s99
    %s121 = sphi 0, %s123
    %s124 = sphi 0, %s121
    %s125 = sphi 0, %s124
    %s141 = sphi 0, %s125
    %s149 = sphi 0, %s151
    %s152 = sphi 0, %s149
    %s153 = sphi 0, %s152
    %s169 = sphi 0, %s153
  $region4: #{stem_forward.4} parent=0 // loop_header_branch
    %13 = sbr.rel (%p11) target = $region8
  $region5: #{stem_forward.4} parent=0 // loop_body
    %s15 = ssub.s32 %s10, 1
    %s16 = ssub.s32 %s10, 2
    %s26 = sadd.s32 1, %s19
    %p27 = scmp.ge.s32.totalorder %s26, 1
    %s28 = scalar_select %p27, 0, %s26
    %s29 = sadd.s32 1, %s18
    %s30 = scalar_select %p27, %s29, %s18
    %p31 = scmp.ge.s32.totalorder %s30, 1
    %s32 = scalar_select %p31, 0, %s30
    %s33 = sadd.s32 1, %s17
    %s34 = scalar_select %p31, %s33, %s17
    %p35 = scmp.ge.s32.totalorder %s34, 16
    %s36 = scalar_select %p35, 0, %s34
    %s37 = ssub.s32 %s17, %s36
    %s38 = ssub.s32 %s19, %s28
    %s39 = sor.u32 %s37, %s38
    %p40 = scmp.eq.s32.totalorder %s39, 0
    %s42 = sadd.s32 %s41, 1
    %s43 = scalar_select %p40, %s41, %s42
    %p46 = pneg %p40
    %p47 = scmp.eq.s32.totalorder %s10, 15
    %p48 = por %p46, %p47
    %p49 = scmp.ne.s32.totalorder %s41, %s44
    %p50 = scmp.eq.s32.totalorder %s10, 0
    %p51 = por %p49, %p50
    %p52 = scmp.ne.s32.totalorder %s41, %s44
    %p53 = scmp.eq.s32.totalorder %s15, 15
    %p54 = por %p52, %p53
    %p55 = scmp.ne.s32.totalorder %s44, %s45
    %p56 = scmp.eq.s32.totalorder %s15, 0
    %p57 = por %p55, %p56
    %p58 = scmp.ne.s32.totalorder %s44, %s45
    %p59 = scmp.eq.s32.totalorder %s16, 15
    %p60 = por %p58, %p59
    %p62 = scmp.ne.s32.totalorder %s45, %s61
    %p63 = scmp.eq.s32.totalorder %s16, 0
    %p64 = por %p62, %p63
    %s65 = ssub.s32 %s19, %s28
    %s66 = ssub.s32 %s18, %s32
    %s67 = sor.u32 %s65, %s66
    %p68 = scmp.eq.s32.totalorder %s67, 0
    %s70 = sadd.s32 %s69, 1
    %s71 = scalar_select %p68, %s69, %s70
    %p74 = pneg %p68
    %p75 = scmp.eq.s32.totalorder %s10, 15
    %p76 = por %p74, %p75
    %p77 = scmp.ne.s32.totalorder %s69, %s72
    %p78 = scmp.eq.s32.totalorder %s10, 0
    %p79 = por %p77, %p78
    %p80 = scmp.ne.s32.totalorder %s69, %s72
    %p81 = scmp.eq.s32.totalorder %s15, 15
    %p82 = por %p80, %p81
    %p83 = scmp.ne.s32.totalorder %s72, %s73
    %p84 = scmp.eq.s32.totalorder %s15, 0
    %p85 = por %p83, %p84
    %p86 = scmp.ne.s32.totalorder %s72, %s73
    %p87 = scmp.eq.s32.totalorder %s16, 15
    %p88 = por %p86, %p87
    %p90 = scmp.ne.s32.totalorder %s73, %s89
    %p91 = scmp.eq.s32.totalorder %s16, 0
    %p92 = por %p90, %p91
    %s93 = ssub.s32 %s18, %s32
    %p94 = scmp.eq.s32.totalorder %s93, 0
    %s96 = sadd.s32 %s95, 1
    %s97 = scalar_select %p94, %s95, %s96
    %p100 = pneg %p94
    %p101 = scmp.eq.s32.totalorder %s10, 15
    %p102 = por %p100, %p101
    %p103 = scmp.ne.s32.totalorder %s95, %s98
    %p104 = scmp.eq.s32.totalorder %s10, 0
    %p105 = por %p103, %p104
    %p106 = scmp.ne.s32.totalorder %s95, %s98
    %p107 = scmp.eq.s32.totalorder %s15, 15
    %p108 = por %p106, %p107
    %p109 = scmp.ne.s32.totalorder %s98, %s99
    %p110 = scmp.eq.s32.totalorder %s15, 0
    %p111 = por %p109, %p110
    %p112 = scmp.ne.s32.totalorder %s98, %s99
    %p113 = scmp.eq.s32.totalorder %s16, 15
    %p114 = por %p112, %p113
    %p116 = scmp.ne.s32.totalorder %s99, %s115
    %p117 = scmp.eq.s32.totalorder %s16, 0
    %p118 = por %p116, %p117
    %s119 = ssub.s32 %s18, %s32
    %p120 = scmp.eq.s32.totalorder %s119, 0
    %s122 = sadd.s32 %s121, 1
    %s123 = scalar_select %p120, %s121, %s122
    %p126 = pneg %p120
    %p127 = scmp.eq.s32.totalorder %s10, 15
    %p128 = por %p126, %p127
    %p129 = scmp.ne.s32.totalorder %s121, %s124
    %p130 = scmp.eq.s32.totalorder %s10, 0
    %p131 = por %p129, %p130
    %p132 = scmp.ne.s32.totalorder %s121, %s124
    %p133 = scmp.eq.s32.totalorder %s15, 15
    %p134 = por %p132, %p133
    %p135 = scmp.ne.s32.totalorder %s124, %s125
    %p136 = scmp.eq.s32.totalorder %s15, 0
    %p137 = por %p135, %p136
    %p138 = scmp.ne.s32.totalorder %s124, %s125
    %p139 = scmp.eq.s32.totalorder %s16, 15
    %p140 = por %p138, %p139
    %p142 = scmp.ne.s32.totalorder %s125, %s141
    %p143 = scmp.eq.s32.totalorder %s16, 0
    %p144 = por %p142, %p143
    %s145 = ssub.s32 %s17, %s36
    %s146 = ssub.s32 %s18, %s32
    %s147 = sor.u32 %s145, %s146
    %p148 = scmp.eq.s32.totalorder %s147, 0
    %s150 = sadd.s32 %s149, 1
    %s151 = scalar_select %p148, %s149, %s150
    %p154 = pneg %p148
    %p155 = scmp.eq.s32.totalorder %s10, 15
    %p156 = por %p154, %p155
    %p157 = scmp.ne.s32.totalorder %s149, %s152
    %p158 = scmp.eq.s32.totalorder %s10, 0
    %p159 = por %p157, %p158
    %p160 = scmp.ne.s32.totalorder %s149, %s152
    %p161 = scmp.eq.s32.totalorder %s15, 15
    %p162 = por %p160, %p161
    %p163 = scmp.ne.s32.totalorder %s152, %s153
    %p164 = scmp.eq.s32.totalorder %s15, 0
    %p165 = por %p163, %p164
    %p166 = scmp.ne.s32.totalorder %s152, %s153
    %p167 = scmp.eq.s32.totalorder %s16, 15
    %p168 = por %p166, %p167
    %p170 = scmp.ne.s32.totalorder %s153, %s169
    %p171 = scmp.eq.s32.totalorder %s16, 0
    %p172 = por %p170, %p171
    %p173 = scmp.le.s32.totalorder 1, %s10
    %p174 = scmp.lt.s32.totalorder %s10, 17
    %p175 = pnand %p173, %p174
    %p176 = pneg %p175
    // Predicated region
    $region9: #{stem_forward.4} parent=5 // pred_check
      _
    $region10: #{stem_forward.4} parent=5 // pred_check_branch
      %178 = sbr.rel (%p175) target = $region12
    $region11: #{stem_forward.4} parent=5 // pred_region
      %s179 = ssub.s32 %s10, 1
      // Predicated region
      $region13: #{stem_forward.4} parent=11 // pred_check
        %p180 = pneg %p85
      $region14: #{stem_forward.4} parent=11 // pred_check_branch
        %182 = sbr.rel (%p180) target = $region16
      $region15: #{stem_forward.4} parent=11 // pred_region
        %s183 = smul.u32 80, %s22
        %p184 = scmp.lt.s32.totalorder %s183, 79
        %s185 = scalar_select %p184, %s183, 79
        %p186 = scmp.lt.s32.totalorder %s21, 0
        %s187 = scalar_select %p186, %s21, 0
        %s188 = sadd.s32 %s187, %s185
        %s189 = smul.addr %s188, 4
        %s190 = scalar_lea.vmem %s1, %s189
        %s191 = smul.u32 80, %s22
      $region16: #{stem_forward.4} parent=11 // pred_fallthru
        _
      // Predicated region
      $region17: #{stem_forward.4} parent=11 // pred_check
        %p192 = pneg %p111
      $region18: #{stem_forward.4} parent=11 // pred_check_branch
        %194 = sbr.rel (%p192) target = $region20
      $region19: #{stem_forward.4} parent=11 // pred_region
        %p195 = scmp.lt.s32.totalorder %s21, 0
        %s196 = scalar_select %p195, %s21, 0
        %s197 = scalar_lea.vmem %s2, %s196
      $region20: #{stem_forward.4} parent=11 // pred_fallthru
        _
      // Predicated region
      $region21: #{stem_forward.4} parent=11 // pred_check
        %p198 = pneg %p137
      $region22: #{stem_forward.4} parent=11 // pred_check_branch
        %200 = sbr.rel (%p198) target = $region24
      $region23: #{stem_forward.4} parent=11 // pred_region
        %p201 = scmp.lt.s32.totalorder %s21, 0
        %s202 = scalar_select %p201, %s21, 0
        %s203 = scalar_lea.vmem %s3, %s202
      $region24: #{stem_forward.4} parent=11 // pred_fallthru
        _
    $region12: #{stem_forward.4} parent=5 // pred_fallthru
      _
    %p204 = scmp.lt.s32.totalorder %s10, 16
    // Predicated region
    $region25: #{stem_forward.4} parent=5 // pred_check
      %p205 = pneg %p204
    $region26: #{stem_forward.4} parent=5 // pred_check_branch
      %207 = sbr.rel (%p205) target = $region28
    $region27: #{stem_forward.4} parent=5 // pred_region
      // Predicated region
      $region29: #{stem_forward.4} parent=27 // pred_check
        %p208 = pneg %p51
      $region30: #{stem_forward.4} parent=27 // pred_check_branch
        %210 = sbr.rel (%p208) target = $region32
      $region31: #{stem_forward.4} parent=27 // pred_region
        %s211 = smul.u32 32, %s17
        %s212 = smul.u32 5, %s19
        %p213 = scmp.lt.s32.totalorder %s211, 511
        %s214 = scalar_select %p213, %s211, 511
        %p215 = scmp.lt.s32.totalorder %s212, 4
        %s216 = scalar_select %p215, %s212, 4
        %s217 = smul.addr %s214, 5
        %s218 = sadd.s32 %s216, %s217
        %s219 = smul.addr %s218, 4
        %s220 = scalar_lea.vmem %s0, %s219
        %s221 = smul.u32 32, %s17
        %s222 = smul.u32 5, %s19
      $region32: #{stem_forward.4} parent=27 // pred_fallthru
        _
    $region28: #{stem_forward.4} parent=5 // pred_fallthru
      _
    %p223 = scmp.le.s32.totalorder 1, %s10
    %p224 = scmp.lt.s32.totalorder %s10, 17
    %p225 = pnand %p223, %p224
    %p226 = pneg %p225
    // Predicated region
    $region33: #{stem_forward.4} parent=5 // pred_check
      _
    $region34: #{stem_forward.4} parent=5 // pred_check_branch
      %228 = sbr.rel (%p225) target = $region36
    $region35: #{stem_forward.4} parent=5 // pred_region
      %s229 = ssub.s32 %s10, 1
      %s230 = smul.u32 32, %s20
      %s231 = smul.u32 5, %s22
      %p232 = scmp.lt.s32.totalorder %s230, 511
      %s233 = scalar_select %p232, %s230, 511
      %p234 = scmp.lt.s32.totalorder %s231, 4
      %s235 = scalar_select %p234, %s231, 4
      %s236 = smul.addr %s233, 5
      %s237 = sadd.s32 %s235, %s236
      %s238 = smul.addr %s237, 4
      %s239 = scalar_lea.vmem %s0, %s238
      %p240 = pneg %p57
      %p241 = pneg %p54
      %s242 = smul.u32 80, %s22
      %p243 = scmp.lt.s32.totalorder %s242, 79
      %s244 = scalar_select %p243, %s242, 79
      %p245 = scmp.lt.s32.totalorder %s21, 0
      %s246 = scalar_select %p245, %s21, 0
      %s247 = sadd.s32 %s246, %s244
      %s248 = smul.addr %s247, 4
      %s249 = scalar_lea.vmem %s1, %s248
      %p250 = pneg %p85
      %p251 = pneg %p82
      %p252 = scmp.lt.s32.totalorder %s21, 0
      %s253 = scalar_select %p252, %s21, 0
      %s254 = scalar_lea.vmem %s2, %s253
      %p255 = pneg %p111
      %p256 = pneg %p108
      %p257 = scmp.lt.s32.totalorder %s21, 0
      %s258 = scalar_select %p257, %s21, 0
      %s259 = scalar_lea.vmem %s3, %s258
      %p260 = pneg %p137
      %p261 = pneg %p134
      %p262 = pneg %p165
      %p263 = pneg %p162
      %s264 = smul.u32 32, %s20
      %p265 = scmp.lt.s32.totalorder %s264, 511
      %s266 = scalar_select %p265, %s264, 511
      %p267 = scmp.lt.s32.totalorder %s21, 0
      %s268 = scalar_select %p267, %s21, 0
      %s269 = sadd.s32 %s268, %s266
      %s270 = smul.addr %s269, 4
      %s271 = scalar_lea.vmem %s4, %s270
      %s272 = smul.u32 32, %s20
      %s273 = smul.u32 5, %s22
      %p274 = scmp.lt.s32.totalorder %s272, 511
      %s275 = scalar_select %p274, %s272, 511
      %p276 = scmp.lt.s32.totalorder %s273, 4
      %s277 = scalar_select %p276, %s273, 4
      %s278 = smul.addr %s275, 5
      %s279 = sadd.s32 %s277, %s278
      %s280 = smul.addr %s279, 4
      %s281 = scalar_lea.vmem %s0, %s280
      %s282 = smul.u32 32, %s20
      %s283 = smul.u32 5, %s22
      %s284 = smul.u32 80, %s22
      %p285 = scmp.lt.s32.totalorder %s284, 79
      %s286 = scalar_select %p285, %s284, 79
      %p287 = scmp.lt.s32.totalorder %s21, 0
      %s288 = scalar_select %p287, %s21, 0
      %s289 = sadd.s32 %s288, %s286
      %s290 = smul.addr %s289, 4
      %s291 = scalar_lea.vmem %s1, %s290
      %s292 = smul.u32 80, %s22
      %p293 = scmp.lt.s32.totalorder %s21, 0
      %s294 = scalar_select %p293, %s21, 0
      %s295 = scalar_lea.vmem %s2, %s294
      %p296 = scmp.lt.s32.totalorder %s21, 0
      %s297 = scalar_select %p296, %s21, 0
      %s298 = scalar_lea.vmem %s3, %s297
      %s299 = smul.u32 32, %s20
      %p300 = scmp.lt.s32.totalorder %s299, 511
      %s301 = scalar_select %p300, %s299, 511
      %p302 = scmp.lt.s32.totalorder %s21, 0
      %s303 = scalar_select %p302, %s21, 0
      %s304 = sadd.s32 %s303, %s301
      %s305 = smul.addr %s304, 4
      %s306 = scalar_lea.vmem %s4, %s305
      %s307 = smul.u32 32, %s20
      %p308 = scmp.eq.s32.totalorder %s22, 0
      // Predicated region
      $region37: #{stem_forward.4} parent=35 // pred_check
        %p309 = pneg %p308
      $region38: #{stem_forward.4} parent=35 // pred_check_branch
        %311 = sbr.rel (%p309) target = $region40
      $region39: #{stem_forward.4} parent=35 // pred_region
        %312 = vst [vmem:[#allocation2] sm:$0xff] 0.0
        %313 = vst [vmem:[#allocation2 + $0x8] sm:$0xff] 0.0
        %314 = vst [vmem:[#allocation2 + $0x10] sm:$0xff] 0.0
        %315 = vst [vmem:[#allocation2 + $0x18] sm:$0xff] 0.0
        %316 = vst [vmem:[#allocation2 + $0x20] sm:$0xff] 0.0
        %317 = vst [vmem:[#allocation2 + $0x28] sm:$0xff] 0.0
        %318 = vst [vmem:[#allocation2 + $0x30] sm:$0xff] 0.0
        %319 = vst [vmem:[#allocation2 + $0x38] sm:$0xff] 0.0
        %320 = vst [vmem:[#allocation2 + $0x40] sm:$0xff] 0.0
        %321 = vst [vmem:[#allocation2 + $0x48] sm:$0xff] 0.0
        %322 = vst [vmem:[#allocation2 + $0x50] sm:$0xff] 0.0
        %323 = vst [vmem:[#allocation2 + $0x58] sm:$0xff] 0.0
        %324 = vst [vmem:[#allocation2 + $0x60] sm:$0xff] 0.0
        %325 = vst [vmem:[#allocation2 + $0x68] sm:$0xff] 0.0
        %326 = vst [vmem:[#allocation2 + $0x70] sm:$0xff] 0.0
        %327 = vst [vmem:[#allocation2 + $0x78] sm:$0xff] 0.0
        %328 = vst [vmem:[#allocation2 + $0x80] sm:$0xff] 0.0
        %329 = vst [vmem:[#allocation2 + $0x88] sm:$0xff] 0.0
        %330 = vst [vmem:[#allocation2 + $0x90] sm:$0xff] 0.0
        %331 = vst [vmem:[#allocation2 + $0x98] sm:$0xff] 0.0
        %332 = vst [vmem:[#allocation2 + $0xa0] sm:$0xff] 0.0
        %333 = vst [vmem:[#allocation2 + $0xa8] sm:$0xff] 0.0
        %334 = vst [vmem:[#allocation2 + $0xb0] sm:$0xff] 0.0
        %335 = vst [vmem:[#allocation2 + $0xb8] sm:$0xff] 0.0
        %336 = vst [vmem:[#allocation2 + $0xc0] sm:$0xff] 0.0
        %337 = vst [vmem:[#allocation2 + $0xc8] sm:$0xff] 0.0
        %338 = vst [vmem:[#allocation2 + $0xd0] sm:$0xff] 0.0
        %339 = vst [vmem:[#allocation2 + $0xd8] sm:$0xff] 0.0
        %340 = vst [vmem:[#allocation2 + $0xe0] sm:$0xff] 0.0
        %341 = vst [vmem:[#allocation2 + $0xe8] sm:$0xff] 0.0
        %342 = vst [vmem:[#allocation2 + $0xf0] sm:$0xff] 0.0
        %343 = vst [vmem:[#allocation2 + $0xf8] sm:$0xff] 0.0
      $region40: #{stem_forward.4} parent=35 // pred_fallthru
        _
      %v344 = vld [vmem:[#allocation2] sm:$0xff]
      %v345 = vld [vmem:[#allocation2 + $0x8] sm:$0xff]
      %v346 = vld [vmem:[#allocation2 + $0x10] sm:$0xff]
      %v347 = vld [vmem:[#allocation2 + $0x18] sm:$0xff]
      %v348 = vld [vmem:[#allocation2 + $0x20] sm:$0xff]
      %v349 = vld [vmem:[#allocation2 + $0x28] sm:$0xff]
      %v350 = vld [vmem:[#allocation2 + $0x30] sm:$0xff]
      %v351 = vld [vmem:[#allocation2 + $0x38] sm:$0xff]
      %v352 = vld [vmem:[#allocation2 + $0x40] sm:$0xff]
      %v353 = vld [vmem:[#allocation2 + $0x48] sm:$0xff]
      %v354 = vld [vmem:[#allocation2 + $0x50] sm:$0xff]
      %v355 = vld [vmem:[#allocation2 + $0x58] sm:$0xff]
      %v356 = vld [vmem:[#allocation2 + $0x60] sm:$0xff]
      %v357 = vld [vmem:[#allocation2 + $0x68] sm:$0xff]
      %v358 = vld [vmem:[#allocation2 + $0x70] sm:$0xff]
      %v359 = vld [vmem:[#allocation2 + $0x78] sm:$0xff]
      %v360 = vld [vmem:[#allocation2 + $0x80] sm:$0xff]
      %v361 = vld [vmem:[#allocation2 + $0x88] sm:$0xff]
      %v362 = vld [vmem:[#allocation2 + $0x90] sm:$0xff]
      %v363 = vld [vmem:[#allocation2 + $0x98] sm:$0xff]
      %v364 = vld [vmem:[#allocation2 + $0xa0] sm:$0xff]
      %v365 = vld [vmem:[#allocation2 + $0xa8] sm:$0xff]
      %v366 = vld [vmem:[#allocation2 + $0xb0] sm:$0xff]
      %v367 = vld [vmem:[#allocation2 + $0xb8] sm:$0xff]
      %v368 = vld [vmem:[#allocation2 + $0xc0] sm:$0xff]
      %v369 = vld [vmem:[#allocation2 + $0xc8] sm:$0xff]
      %v370 = vld [vmem:[#allocation2 + $0xd0] sm:$0xff]
      %v371 = vld [vmem:[#allocation2 + $0xd8] sm:$0xff]
      %v372 = vld [vmem:[#allocation2 + $0xe0] sm:$0xff]
      %v373 = vld [vmem:[#allocation2 + $0xe8] sm:$0xff]
      %v374 = vld [vmem:[#allocation2 + $0xf0] sm:$0xff]
      %v375 = vld [vmem:[#allocation2 + $0xf8] sm:$0xff]
      %v376 = vld [vmem:[%s281] sm:$0xff]
      %v377 = vld [vmem:[%s281 + $0x8] sm:$0xff]
      %v378 = vld [vmem:[%s281 + $0x10] sm:$0xf]
      %v379 = vld [vmem:[%s281 + $0x14] sm:$0xff]
      %v380 = vld [vmem:[%s281 + $0x1c] sm:$0xff]
      %v381 = vld [vmem:[%s281 + $0x24] sm:$0xf]
      %v382 = vld [vmem:[%s281 + $0x28] sm:$0xff]
      %v383 = vld [vmem:[%s281 + $0x30] sm:$0xff]
      %v384 = vld [vmem:[%s281 + $0x38] sm:$0xf]
      %v385 = vld [vmem:[%s281 + $0x3c] sm:$0xff]
      %v386 = vld [vmem:[%s281 + $0x44] sm:$0xff]
      %v387 = vld [vmem:[%s281 + $0x4c] sm:$0xf]
      %v388 = vld [vmem:[%s281 + $0x50] sm:$0xff]
      %v389 = vld [vmem:[%s281 + $0x58] sm:$0xff]
      %v390 = vld [vmem:[%s281 + $0x60] sm:$0xf]
      %v391 = vld [vmem:[%s281 + $0x64] sm:$0xff]
      %v392 = vld [vmem:[%s281 + $0x6c] sm:$0xff]
      %v393 = vld [vmem:[%s281 + $0x74] sm:$0xf]
      %v394 = vld [vmem:[%s281 + $0x78] sm:$0xff]
      %v395 = vld [vmem:[%s281 + $0x80] sm:$0xff]
      %v396 = vld [vmem:[%s281 + $0x88] sm:$0xf]
      %v397 = vld [vmem:[%s281 + $0x8c] sm:$0xff]
      %v398 = vld [vmem:[%s281 + $0x94] sm:$0xff]
      %v399 = vld [vmem:[%s281 + $0x9c] sm:$0xf]
      %v400 = vld [vmem:[%s281 + $0xa0] sm:$0xff]
      %v401 = vld [vmem:[%s281 + $0xa8] sm:$0xff]
      %v402 = vld [vmem:[%s281 + $0xb0] sm:$0xf]
      %v403 = vld [vmem:[%s281 + $0xb4] sm:$0xff]
      %v404 = vld [vmem:[%s281 + $0xbc] sm:$0xff]
      %v405 = vld [vmem:[%s281 + $0xc4] sm:$0xf]
      %v406 = vld [vmem:[%s281 + $0xc8] sm:$0xff]
      %v407 = vld [vmem:[%s281 + $0xd0] sm:$0xff]
      %v408 = vld [vmem:[%s281 + $0xd8] sm:$0xf]
      %v409 = vld [vmem:[%s281 + $0xdc] sm:$0xff]
      %v410 = vld [vmem:[%s281 + $0xe4] sm:$0xff]
      %v411 = vld [vmem:[%s281 + $0xec] sm:$0xf]
      %v412 = vld [vmem:[%s281 + $0xf0] sm:$0xff]
      %v413 = vld [vmem:[%s281 + $0xf8] sm:$0xff]
      %v414 = vld [vmem:[%s281 + $0x100] sm:$0xf]
      %v415 = vld [vmem:[%s281 + $0x104] sm:$0xff]
      %v416 = vld [vmem:[%s281 + $0x10c] sm:$0xff]
      %v417 = vld [vmem:[%s281 + $0x114] sm:$0xf]
      %v418 = vld [vmem:[%s281 + $0x118] sm:$0xff]
      %v419 = vld [vmem:[%s281 + $0x120] sm:$0xff]
      %v420 = vld [vmem:[%s281 + $0x128] sm:$0xf]
      %v421 = vld [vmem:[%s281 + $0x12c] sm:$0xff]
      %v422 = vld [vmem:[%s281 + $0x134] sm:$0xff]
      %v423 = vld [vmem:[%s281 + $0x13c] sm:$0xf]
      %v424 = vld [vmem:[%s281 + $0x140] sm:$0xff]
      %v425 = vld [vmem:[%s281 + $0x148] sm:$0xff]
      %v426 = vld [vmem:[%s281 + $0x150] sm:$0xf]
      %v427 = vld [vmem:[%s281 + $0x154] sm:$0xff]
      %v428 = vld [vmem:[%s281 + $0x15c] sm:$0xff]
      %v429 = vld [vmem:[%s281 + $0x164] sm:$0xf]
      %v430 = vld [vmem:[%s281 + $0x168] sm:$0xff]
      %v431 = vld [vmem:[%s281 + $0x170] sm:$0xff]
      %v432 = vld [vmem:[%s281 + $0x178] sm:$0xf]
      %v433 = vld [vmem:[%s281 + $0x17c] sm:$0xff]
      %v434 = vld [vmem:[%s281 + $0x184] sm:$0xff]
      %v435 = vld [vmem:[%s281 + $0x18c] sm:$0xf]
      %v436 = vld [vmem:[%s281 + $0x190] sm:$0xff]
      %v437 = vld [vmem:[%s281 + $0x198] sm:$0xff]
      %v438 = vld [vmem:[%s281 + $0x1a0] sm:$0xf]
      %v439 = vld [vmem:[%s281 + $0x1a4] sm:$0xff]
      %v440 = vld [vmem:[%s281 + $0x1ac] sm:$0xff]
      %v441 = vld [vmem:[%s281 + $0x1b4] sm:$0xf]
      %v442 = vld [vmem:[%s281 + $0x1b8] sm:$0xff]
      %v443 = vld [vmem:[%s281 + $0x1c0] sm:$0xff]
      %v444 = vld [vmem:[%s281 + $0x1c8] sm:$0xf]
      %v445 = vld [vmem:[%s281 + $0x1cc] sm:$0xff]
      %v446 = vld [vmem:[%s281 + $0x1d4] sm:$0xff]
      %v447 = vld [vmem:[%s281 + $0x1dc] sm:$0xf]
      %v448 = vld [vmem:[%s281 + $0x1e0] sm:$0xff]
      %v449 = vld [vmem:[%s281 + $0x1e8] sm:$0xff]
      %v450 = vld [vmem:[%s281 + $0x1f0] sm:$0xf]
      %v451 = vld [vmem:[%s281 + $0x1f4] sm:$0xff]
      %v452 = vld [vmem:[%s281 + $0x1fc] sm:$0xff]
      %v453 = vld [vmem:[%s281 + $0x204] sm:$0xf]
      %v454 = vld [vmem:[%s281 + $0x208] sm:$0xff]
      %v455 = vld [vmem:[%s281 + $0x210] sm:$0xff]
      %v456 = vld [vmem:[%s281 + $0x218] sm:$0xf]
      %v457 = vld [vmem:[%s281 + $0x21c] sm:$0xff]
      %v458 = vld [vmem:[%s281 + $0x224] sm:$0xff]
      %v459 = vld [vmem:[%s281 + $0x22c] sm:$0xf]
      %v460 = vld [vmem:[%s281 + $0x230] sm:$0xff]
      %v461 = vld [vmem:[%s281 + $0x238] sm:$0xff]
      %v462 = vld [vmem:[%s281 + $0x240] sm:$0xf]
      %v463 = vld [vmem:[%s281 + $0x244] sm:$0xff]
      %v464 = vld [vmem:[%s281 + $0x24c] sm:$0xff]
      %v465 = vld [vmem:[%s281 + $0x254] sm:$0xf]
      %v466 = vld [vmem:[%s281 + $0x258] sm:$0xff]
      %v467 = vld [vmem:[%s281 + $0x260] sm:$0xff]
      %v468 = vld [vmem:[%s281 + $0x268] sm:$0xf]
      %v469 = vld [vmem:[%s281 + $0x26c] sm:$0xff]
      %v470 = vld [vmem:[%s281 + $0x274] sm:$0xff]
      %v471 = vld [vmem:[%s281 + $0x27c] sm:$0xf]
      %v472 = vld [vmem:[%s291] sm:$0xf]
      %v473 = vld [vmem:[%s291 + $0x4] sm:$0xf]
      %v474 = vld [vmem:[%s291 + $0x8] sm:$0xf]
      %v475 = vld [vmem:[%s291 + $0xc] sm:$0xf]
      %v476 = vld [vmem:[%s291 + $0x10] sm:$0xf]
      %v477 = vld [vmem:[%s291 + $0x14] sm:$0xf]
      %v478 = vld [vmem:[%s291 + $0x18] sm:$0xf]
      %v479 = vld [vmem:[%s291 + $0x1c] sm:$0xf]
      %v480 = vld [vmem:[%s291 + $0x20] sm:$0xf]
      %v481 = vld [vmem:[%s291 + $0x24] sm:$0xf]
      %v482 = vld [vmem:[%s291 + $0x28] sm:$0xf]
      %v483 = vld [vmem:[%s291 + $0x2c] sm:$0xf]
      %v484 = vld [vmem:[%s291 + $0x30] sm:$0xf]
      %v485 = vld [vmem:[%s291 + $0x34] sm:$0xf]
      %v486 = vld [vmem:[%s291 + $0x38] sm:$0xf]
      %v487 = vld [vmem:[%s291 + $0x3c] sm:$0xf]
      %v488 = vld [vmem:[%s291 + $0x40] sm:$0xf]
      %v489 = vld [vmem:[%s291 + $0x44] sm:$0xf]
      %v490 = vld [vmem:[%s291 + $0x48] sm:$0xf]
      %v491 = vld [vmem:[%s291 + $0x4c] sm:$0xf]
      %v492 = vld [vmem:[%s291 + $0x50] sm:$0xf]
      %v493 = vld [vmem:[%s291 + $0x54] sm:$0xf]
      %v494 = vld [vmem:[%s291 + $0x58] sm:$0xf]
      %v495 = vld [vmem:[%s291 + $0x5c] sm:$0xf]
      %v496 = vld [vmem:[%s291 + $0x60] sm:$0xf]
      %v497 = vld [vmem:[%s291 + $0x64] sm:$0xf]
      %v498 = vld [vmem:[%s291 + $0x68] sm:$0xf]
      %v499 = vld [vmem:[%s291 + $0x6c] sm:$0xf]
      %v500 = vld [vmem:[%s291 + $0x70] sm:$0xf]
      %v501 = vld [vmem:[%s291 + $0x74] sm:$0xf]
      %v502 = vld [vmem:[%s291 + $0x78] sm:$0xf]
      %v503 = vld [vmem:[%s291 + $0x7c] sm:$0xf]
      %v504 = vld [vmem:[%s291 + $0x80] sm:$0xf]
      %v505 = vld [vmem:[%s291 + $0x84] sm:$0xf]
      %v506 = vld [vmem:[%s291 + $0x88] sm:$0xf]
      %v507 = vld [vmem:[%s291 + $0x8c] sm:$0xf]
      %v508 = vld [vmem:[%s291 + $0x90] sm:$0xf]
      %v509 = vld [vmem:[%s291 + $0x94] sm:$0xf]
      %v510 = vld [vmem:[%s291 + $0x98] sm:$0xf]
      %v511 = vld [vmem:[%s291 + $0x9c] sm:$0xf]
      %v512 = vld [vmem:[%s291 + $0xa0] sm:$0xf]
      %v513 = vld [vmem:[%s291 + $0xa4] sm:$0xf]
      %v514 = vld [vmem:[%s291 + $0xa8] sm:$0xf]
      %v515 = vld [vmem:[%s291 + $0xac] sm:$0xf]
      %v516 = vld [vmem:[%s291 + $0xb0] sm:$0xf]
      %v517 = vld [vmem:[%s291 + $0xb4] sm:$0xf]
      %v518 = vld [vmem:[%s291 + $0xb8] sm:$0xf]
      %v519 = vld [vmem:[%s291 + $0xbc] sm:$0xf]
      %v520 = vld [vmem:[%s291 + $0xc0] sm:$0xf]
      %v521 = vld [vmem:[%s291 + $0xc4] sm:$0xf]
      %v522 = vld [vmem:[%s291 + $0xc8] sm:$0xf]
      %v523 = vld [vmem:[%s291 + $0xcc] sm:$0xf]
      %v524 = vld [vmem:[%s291 + $0xd0] sm:$0xf]
      %v525 = vld [vmem:[%s291 + $0xd4] sm:$0xf]
      %v526 = vld [vmem:[%s291 + $0xd8] sm:$0xf]
      %v527 = vld [vmem:[%s291 + $0xdc] sm:$0xf]
      %v528 = vld [vmem:[%s291 + $0xe0] sm:$0xf]
      %v529 = vld [vmem:[%s291 + $0xe4] sm:$0xf]
      %v530 = vld [vmem:[%s291 + $0xe8] sm:$0xf]
      %v531 = vld [vmem:[%s291 + $0xec] sm:$0xf]
      %v532 = vld [vmem:[%s291 + $0xf0] sm:$0xf]
      %v533 = vld [vmem:[%s291 + $0xf4] sm:$0xf]
      %v534 = vld [vmem:[%s291 + $0xf8] sm:$0xf]
      %v535 = vld [vmem:[%s291 + $0xfc] sm:$0xf]
      %v536 = vld [vmem:[%s291 + $0x100] sm:$0xf]
      %v537 = vld [vmem:[%s291 + $0x104] sm:$0xf]
      %v538 = vld [vmem:[%s291 + $0x108] sm:$0xf]
      %v539 = vld [vmem:[%s291 + $0x10c] sm:$0xf]
      %v540 = vld [vmem:[%s291 + $0x110] sm:$0xf]
      %v541 = vld [vmem:[%s291 + $0x114] sm:$0xf]
      %v542 = vld [vmem:[%s291 + $0x118] sm:$0xf]
      %v543 = vld [vmem:[%s291 + $0x11c] sm:$0xf]
      %v544 = vld [vmem:[%s291 + $0x120] sm:$0xf]
      %v545 = vld [vmem:[%s291 + $0x124] sm:$0xf]
      %v546 = vld [vmem:[%s291 + $0x128] sm:$0xf]
      %v547 = vld [vmem:[%s291 + $0x12c] sm:$0xf]
      %v548 = vld [vmem:[%s291 + $0x130] sm:$0xf]
      %v549 = vld [vmem:[%s291 + $0x134] sm:$0xf]
      %v550 = vld [vmem:[%s291 + $0x138] sm:$0xf]
      %v551 = vld [vmem:[%s291 + $0x13c] sm:$0xf]
      %v648 = vunpack.c.l.b16 %v376
      %v649 = vunpack.c.h.b16 %v376
      %v650 = vunpack.c.l.b16 %v377
      %v651 = vunpack.c.h.b16 %v377
      %v652 = vunpack.c.l.b16 %v378
      %v653 = vunpack.c.l.b16 %v379
      %v654 = vunpack.c.h.b16 %v379
      %v655 = vunpack.c.l.b16 %v380
      %v656 = vunpack.c.h.b16 %v380
      %v657 = vunpack.c.l.b16 %v381
      %v658 = vunpack.c.l.b16 %v382
      %v659 = vunpack.c.h.b16 %v382
      %v660 = vunpack.c.l.b16 %v383
      %v661 = vunpack.c.h.b16 %v383
      %v662 = vunpack.c.l.b16 %v384
      %v663 = vunpack.c.l.b16 %v385
      %v664 = vunpack.c.h.b16 %v385
      %v665 = vunpack.c.l.b16 %v386
      %v666 = vunpack.c.h.b16 %v386
      %v667 = vunpack.c.l.b16 %v387
      %v668 = vunpack.c.l.b16 %v388
      %v669 = vunpack.c.h.b16 %v388
      %v670 = vunpack.c.l.b16 %v389
      %v671 = vunpack.c.h.b16 %v389
      %v672 = vunpack.c.l.b16 %v390
      %v673 = vunpack.c.l.b16 %v391
      %v674 = vunpack.c.h.b16 %v391
      %v675 = vunpack.c.l.b16 %v392
      %v676 = vunpack.c.h.b16 %v392
      %v677 = vunpack.c.l.b16 %v393
      %v678 = vunpack.c.l.b16 %v394
      %v679 = vunpack.c.h.b16 %v394
      %v680 = vunpack.c.l.b16 %v395
      %v681 = vunpack.c.h.b16 %v395
      %v682 = vunpack.c.l.b16 %v396
      %v683 = vunpack.c.l.b16 %v397
      %v684 = vunpack.c.h.b16 %v397
      %v685 = vunpack.c.l.b16 %v398
      %v686 = vunpack.c.h.b16 %v398
      %v687 = vunpack.c.l.b16 %v399
      %v688 = vunpack.c.l.b16 %v400
      %v689 = vunpack.c.h.b16 %v400
      %v690 = vunpack.c.l.b16 %v401
      %v691 = vunpack.c.h.b16 %v401
      %v692 = vunpack.c.l.b16 %v402
      %v693 = vunpack.c.l.b16 %v403
      %v694 = vunpack.c.h.b16 %v403
      %v695 = vunpack.c.l.b16 %v404
      %v696 = vunpack.c.h.b16 %v404
      %v697 = vunpack.c.l.b16 %v405
      %v698 = vunpack.c.l.b16 %v406
      %v699 = vunpack.c.h.b16 %v406
      %v700 = vunpack.c.l.b16 %v407
      %v701 = vunpack.c.h.b16 %v407
      %v702 = vunpack.c.l.b16 %v408
      %v703 = vunpack.c.l.b16 %v409
      %v704 = vunpack.c.h.b16 %v409
      %v705 = vunpack.c.l.b16 %v410
      %v706 = vunpack.c.h.b16 %v410
      %v707 = vunpack.c.l.b16 %v411
      %v708 = vunpack.c.l.b16 %v412
      %v709 = vunpack.c.h.b16 %v412
      %v710 = vunpack.c.l.b16 %v413
      %v711 = vunpack.c.h.b16 %v413
      %v712 = vunpack.c.l.b16 %v414
      %v713 = vunpack.c.l.b16 %v415
      %v714 = vunpack.c.h.b16 %v415
      %v715 = vunpack.c.l.b16 %v416
      %v716 = vunpack.c.h.b16 %v416
      %v717 = vunpack.c.l.b16 %v417
      %v718 = vunpack.c.l.b16 %v418
      %v719 = vunpack.c.h.b16 %v418
      %v720 = vunpack.c.l.b16 %v419
      %v721 = vunpack.c.h.b16 %v419
      %v722 = vunpack.c.l.b16 %v420
      %v723 = vunpack.c.l.b16 %v421
      %v724 = vunpack.c.h.b16 %v421
      %v725 = vunpack.c.l.b16 %v422
      %v726 = vunpack.c.h.b16 %v422
      %v727 = vunpack.c.l.b16 %v423
      %v728 = vunpack.c.l.b16 %v424
      %v729 = vunpack.c.h.b16 %v424
      %v730 = vunpack.c.l.b16 %v425
      %v731 = vunpack.c.h.b16 %v425
      %v732 = vunpack.c.l.b16 %v426
      %v733 = vunpack.c.l.b16 %v427
      %v734 = vunpack.c.h.b16 %v427
      %v735 = vunpack.c.l.b16 %v428
      %v736 = vunpack.c.h.b16 %v428
      %v737 = vunpack.c.l.b16 %v429
      %v738 = vunpack.c.l.b16 %v430
      %v739 = vunpack.c.h.b16 %v430
      %v740 = vunpack.c.l.b16 %v431
      %v741 = vunpack.c.h.b16 %v431
      %v742 = vunpack.c.l.b16 %v432
      %v743 = vunpack.c.l.b16 %v433
      %v744 = vunpack.c.h.b16 %v433
      %v745 = vunpack.c.l.b16 %v434
      %v746 = vunpack.c.h.b16 %v434
      %v747 = vunpack.c.l.b16 %v435
      %v748 = vunpack.c.l.b16 %v436
      %v749 = vunpack.c.h.b16 %v436
      %v750 = vunpack.c.l.b16 %v437
      %v751 = vunpack.c.h.b16 %v437
      %v752 = vunpack.c.l.b16 %v438
      %v753 = vunpack.c.l.b16 %v439
      %v754 = vunpack.c.h.b16 %v439
      %v755 = vunpack.c.l.b16 %v440
      %v756 = vunpack.c.h.b16 %v440
      %v757 = vunpack.c.l.b16 %v441
      %v758 = vunpack.c.l.b16 %v442
      %v759 = vunpack.c.h.b16 %v442
      %v760 = vunpack.c.l.b16 %v443
      %v761 = vunpack.c.h.b16 %v443
      %v762 = vunpack.c.l.b16 %v444
      %v763 = vunpack.c.l.b16 %v445
      %v764 = vunpack.c.h.b16 %v445
      %v765 = vunpack.c.l.b16 %v446
      %v766 = vunpack.c.h.b16 %v446
      %v767 = vunpack.c.l.b16 %v447
      %v768 = vunpack.c.l.b16 %v448
      %v769 = vunpack.c.h.b16 %v448
      %v770 = vunpack.c.l.b16 %v449
      %v771 = vunpack.c.h.b16 %v449
      %v772 = vunpack.c.l.b16 %v450
      %v773 = vunpack.c.l.b16 %v451
      %v774 = vunpack.c.h.b16 %v451
      %v775 = vunpack.c.l.b16 %v452
      %v776 = vunpack.c.h.b16 %v452
      %v777 = vunpack.c.l.b16 %v453
      %v778 = vunpack.c.l.b16 %v454
      %v779 = vunpack.c.h.b16 %v454
      %v780 = vunpack.c.l.b16 %v455
      %v781 = vunpack.c.h.b16 %v455
      %v782 = vunpack.c.l.b16 %v456
      %v783 = vunpack.c.l.b16 %v457
      %v784 = vunpack.c.h.b16 %v457
      %v785 = vunpack.c.l.b16 %v458
      %v786 = vunpack.c.h.b16 %v458
      %v787 = vunpack.c.l.b16 %v459
      %v788 = vunpack.c.l.b16 %v460
      %v789 = vunpack.c.h.b16 %v460
      %v790 = vunpack.c.l.b16 %v461
      %v791 = vunpack.c.h.b16 %v461
      %v792 = vunpack.c.l.b16 %v462
      %v793 = vunpack.c.l.b16 %v463
      %v794 = vunpack.c.h.b16 %v463
      %v795 = vunpack.c.l.b16 %v464
      %v796 = vunpack.c.h.b16 %v464
      %v797 = vunpack.c.l.b16 %v465
      %v798 = vunpack.c.l.b16 %v466
      %v799 = vunpack.c.h.b16 %v466
      %v800 = vunpack.c.l.b16 %v467
      %v801 = vunpack.c.h.b16 %v467
      %v802 = vunpack.c.l.b16 %v468
      %v803 = vunpack.c.l.b16 %v469
      %v804 = vunpack.c.h.b16 %v469
      %v805 = vunpack.c.l.b16 %v470
      %v806 = vunpack.c.h.b16 %v470
      %v807 = vunpack.c.l.b16 %v471
      %v808 = vpack.c.b16 %v653, %v648
      %v809 = vpack.c.b16 %v654, %v649
      %v810 = vpack.c.b16 %v655, %v650
      %v811 = vpack.c.b16 %v656, %v651
      %v812 = vpack.c.b16 %v657, %v652
      %v813 = vpack.c.b16 %v663, %v658
      %v814 = vpack.c.b16 %v664, %v659
      %v815 = vpack.c.b16 %v665, %v660
      %v816 = vpack.c.b16 %v666, %v661
      %v817 = vpack.c.b16 %v667, %v662
      %v818 = vpack.c.b16 %v673, %v668
      %v819 = vpack.c.b16 %v674, %v669
      %v820 = vpack.c.b16 %v675, %v670
      %v821 = vpack.c.b16 %v676, %v671
      %v822 = vpack.c.b16 %v677, %v672
      %v823 = vpack.c.b16 %v683, %v678
      %v824 = vpack.c.b16 %v684, %v679
      %v825 = vpack.c.b16 %v685, %v680
      %v826 = vpack.c.b16 %v686, %v681
      %v827 = vpack.c.b16 %v687, %v682
      %v828 = vpack.c.b16 %v693, %v688
      %v829 = vpack.c.b16 %v694, %v689
      %v830 = vpack.c.b16 %v695, %v690
      %v831 = vpack.c.b16 %v696, %v691
      %v832 = vpack.c.b16 %v697, %v692
      %v833 = vpack.c.b16 %v703, %v698
      %v834 = vpack.c.b16 %v704, %v699
      %v835 = vpack.c.b16 %v705, %v700
      %v836 = vpack.c.b16 %v706, %v701
      %v837 = vpack.c.b16 %v707, %v702
      %v838 = vpack.c.b16 %v713, %v708
      %v839 = vpack.c.b16 %v714, %v709
      %v840 = vpack.c.b16 %v715, %v710
      %v841 = vpack.c.b16 %v716, %v711
      %v842 = vpack.c.b16 %v717, %v712
      %v843 = vpack.c.b16 %v723, %v718
      %v844 = vpack.c.b16 %v724, %v719
      %v845 = vpack.c.b16 %v725, %v720
      %v846 = vpack.c.b16 %v726, %v721
      %v847 = vpack.c.b16 %v727, %v722
      %v848 = vpack.c.b16 %v733, %v728
      %v849 = vpack.c.b16 %v734, %v729
      %v850 = vpack.c.b16 %v735, %v730
      %v851 = vpack.c.b16 %v736, %v731
      %v852 = vpack.c.b16 %v737, %v732
      %v853 = vpack.c.b16 %v743, %v738
      %v854 = vpack.c.b16 %v744, %v739
      %v855 = vpack.c.b16 %v745, %v740
      %v856 = vpack.c.b16 %v746, %v741
      %v857 = vpack.c.b16 %v747, %v742
      %v858 = vpack.c.b16 %v753, %v748
      %v859 = vpack.c.b16 %v754, %v749
      %v860 = vpack.c.b16 %v755, %v750
      %v861 = vpack.c.b16 %v756, %v751
      %v862 = vpack.c.b16 %v757, %v752
      %v863 = vpack.c.b16 %v763, %v758
      %v864 = vpack.c.b16 %v764, %v759
      %v865 = vpack.c.b16 %v765, %v760
      %v866 = vpack.c.b16 %v766, %v761
      %v867 = vpack.c.b16 %v767, %v762
      %v868 = vpack.c.b16 %v773, %v768
      %v869 = vpack.c.b16 %v774, %v769
      %v870 = vpack.c.b16 %v775, %v770
      %v871 = vpack.c.b16 %v776, %v771
      %v872 = vpack.c.b16 %v777, %v772
      %v873 = vpack.c.b16 %v783, %v778
      %v874 = vpack.c.b16 %v784, %v779
      %v875 = vpack.c.b16 %v785, %v780
      %v876 = vpack.c.b16 %v786, %v781
      %v877 = vpack.c.b16 %v787, %v782
      %v878 = vpack.c.b16 %v793, %v788
      %v879 = vpack.c.b16 %v794, %v789
      %v880 = vpack.c.b16 %v795, %v790
      %v881 = vpack.c.b16 %v796, %v791
      %v882 = vpack.c.b16 %v797, %v792
      %v883 = vpack.c.b16 %v803, %v798
      %v884 = vpack.c.b16 %v804, %v799
      %v885 = vpack.c.b16 %v805, %v800
      %v886 = vpack.c.b16 %v806, %v801
      %v887 = vpack.c.b16 %v807, %v802
      %v1048 = vunpack.c.l.b16 %v472
      %v1049 = vunpack.c.l.b16 %v473
      %v1050 = vunpack.c.l.b16 %v474
      %v1051 = vunpack.c.l.b16 %v475
      %v1052 = vunpack.c.l.b16 %v476
      %v1053 = vunpack.c.l.b16 %v477
      %v1054 = vunpack.c.l.b16 %v478
      %v1055 = vunpack.c.l.b16 %v479
      %v1056 = vunpack.c.l.b16 %v480
      %v1057 = vunpack.c.l.b16 %v481
      %v1058 = vunpack.c.l.b16 %v482
      %v1059 = vunpack.c.l.b16 %v483
      %v1060 = vunpack.c.l.b16 %v484
      %v1061 = vunpack.c.l.b16 %v485
      %v1062 = vunpack.c.l.b16 %v486
      %v1063 = vunpack.c.l.b16 %v487
      %v1064 = vunpack.c.l.b16 %v488
      %v1065 = vunpack.c.l.b16 %v489
      %v1066 = vunpack.c.l.b16 %v490
      %v1067 = vunpack.c.l.b16 %v491
      %v1068 = vunpack.c.l.b16 %v492
      %v1069 = vunpack.c.l.b16 %v493
      %v1070 = vunpack.c.l.b16 %v494
      %v1071 = vunpack.c.l.b16 %v495
      %v1072 = vunpack.c.l.b16 %v496
      %v1073 = vunpack.c.l.b16 %v497
      %v1074 = vunpack.c.l.b16 %v498
      %v1075 = vunpack.c.l.b16 %v499
      %v1076 = vunpack.c.l.b16 %v500
      %v1077 = vunpack.c.l.b16 %v501
      %v1078 = vunpack.c.l.b16 %v502
      %v1079 = vunpack.c.l.b16 %v503
      %v1080 = vunpack.c.l.b16 %v504
      %v1081 = vunpack.c.l.b16 %v505
      %v1082 = vunpack.c.l.b16 %v506
      %v1083 = vunpack.c.l.b16 %v507
      %v1084 = vunpack.c.l.b16 %v508
      %v1085 = vunpack.c.l.b16 %v509
      %v1086 = vunpack.c.l.b16 %v510
      %v1087 = vunpack.c.l.b16 %v511
      %v1088 = vunpack.c.l.b16 %v512
      %v1089 = vunpack.c.l.b16 %v513
      %v1090 = vunpack.c.l.b16 %v514
      %v1091 = vunpack.c.l.b16 %v515
      %v1092 = vunpack.c.l.b16 %v516
      %v1093 = vunpack.c.l.b16 %v517
      %v1094 = vunpack.c.l.b16 %v518
      %v1095 = vunpack.c.l.b16 %v519
      %v1096 = vunpack.c.l.b16 %v520
      %v1097 = vunpack.c.l.b16 %v521
      %v1098 = vunpack.c.l.b16 %v522
      %v1099 = vunpack.c.l.b16 %v523
      %v1100 = vunpack.c.l.b16 %v524
      %v1101 = vunpack.c.l.b16 %v525
      %v1102 = vunpack.c.l.b16 %v526
      %v1103 = vunpack.c.l.b16 %v527
      %v1104 = vunpack.c.l.b16 %v528
      %v1105 = vunpack.c.l.b16 %v529
      %v1106 = vunpack.c.l.b16 %v530
      %v1107 = vunpack.c.l.b16 %v531
      %v1108 = vunpack.c.l.b16 %v532
      %v1109 = vunpack.c.l.b16 %v533
      %v1110 = vunpack.c.l.b16 %v534
      %v1111 = vunpack.c.l.b16 %v535
      %v1112 = vunpack.c.l.b16 %v536
      %v1113 = vunpack.c.l.b16 %v537
      %v1114 = vunpack.c.l.b16 %v538
      %v1115 = vunpack.c.l.b16 %v539
      %v1116 = vunpack.c.l.b16 %v540
      %v1117 = vunpack.c.l.b16 %v541
      %v1118 = vunpack.c.l.b16 %v542
      %v1119 = vunpack.c.l.b16 %v543
      %v1120 = vunpack.c.l.b16 %v544
      %v1121 = vunpack.c.l.b16 %v545
      %v1122 = vunpack.c.l.b16 %v546
      %v1123 = vunpack.c.l.b16 %v547
      %v1124 = vunpack.c.l.b16 %v548
      %v1125 = vunpack.c.l.b16 %v549
      %v1126 = vunpack.c.l.b16 %v550
      %v1127 = vunpack.c.l.b16 %v551
      %v1128 = vpack.c.b16 %v1049, %v1048
      %v1129 = vpack.c.b16 %v1051, %v1050
      %v1130 = vpack.c.b16 %v1053, %v1052
      %v1131 = vpack.c.b16 %v1055, %v1054
      %v1132 = vpack.c.b16 %v1057, %v1056
      %v1133 = vpack.c.b16 %v1059, %v1058
      %v1134 = vpack.c.b16 %v1061, %v1060
      %v1135 = vpack.c.b16 %v1063, %v1062
      %v1136 = vpack.c.b16 %v1065, %v1064
      %v1137 = vpack.c.b16 %v1067, %v1066
      %v1138 = vpack.c.b16 %v1069, %v1068
      %v1139 = vpack.c.b16 %v1071, %v1070
      %v1140 = vpack.c.b16 %v1073, %v1072
      %v1141 = vpack.c.b16 %v1075, %v1074
      %v1142 = vpack.c.b16 %v1077, %v1076
      %v1143 = vpack.c.b16 %v1079, %v1078
      %v1144 = vpack.c.b16 %v1081, %v1080
      %v1145 = vpack.c.b16 %v1083, %v1082
      %v1146 = vpack.c.b16 %v1085, %v1084
      %v1147 = vpack.c.b16 %v1087, %v1086
      %v1148 = vpack.c.b16 %v1089, %v1088
      %v1149 = vpack.c.b16 %v1091, %v1090
      %v1150 = vpack.c.b16 %v1093, %v1092
      %v1151 = vpack.c.b16 %v1095, %v1094
      %v1152 = vpack.c.b16 %v1097, %v1096
      %v1153 = vpack.c.b16 %v1099, %v1098
      %v1154 = vpack.c.b16 %v1101, %v1100
      %v1155 = vpack.c.b16 %v1103, %v1102
      %v1156 = vpack.c.b16 %v1105, %v1104
      %v1157 = vpack.c.b16 %v1107, %v1106
      %v1158 = vpack.c.b16 %v1109, %v1108
      %v1159 = vpack.c.b16 %v1111, %v1110
      %v1160 = vpack.c.b16 %v1113, %v1112
      %v1161 = vpack.c.b16 %v1115, %v1114
      %v1162 = vpack.c.b16 %v1117, %v1116
      %v1163 = vpack.c.b16 %v1119, %v1118
      %v1164 = vpack.c.b16 %v1121, %v1120
      %v1165 = vpack.c.b16 %v1123, %v1122
      %v1166 = vpack.c.b16 %v1125, %v1124
      %v1167 = vpack.c.b16 %v1127, %v1126
      %1208 = vmatpush.bf16.msra.mxu0 %v1135
      %1209 = vmatpush.bf16.msra.mxu0 %v1134
      %1210 = vmatpush.bf16.msra.mxu0 %v1133
      %1211 = vmatpush.bf16.msra.mxu0 %v1132
      %1212 = vmatpush.bf16.msra.mxu0 %v1131
      %1213 = vmatpush.bf16.msra.mxu0 %v1130
      %1214 = vmatpush.bf16.msra.mxu0 %v1129
      %1215 = vmatpush.bf16.msra.mxu0 %v1128
      %1216 = vmatmul.bf16.gmra.mxu0 %v808
      %v1217 = vpop.f32.mrf.mxu0
      %v1218 = vadd.f32 0.0, %v1217
      %v1219 = vpop.f32.mrf.mxu0
      %v1220 = vadd.f32 0.0, %v1219
      %1221 = vmatmul.bf16.gmra.mxu0 %v813
      %v1222 = vpop.f32.mrf.mxu0
      %v1223 = vadd.f32 0.0, %v1222
      %v1224 = vpop.f32.mrf.mxu0
      %v1225 = vadd.f32 0.0, %v1224
      %1226 = vmatmul.bf16.gmra.mxu0 %v818
      %v1227 = vpop.f32.mrf.mxu0
      %v1228 = vadd.f32 0.0, %v1227
      %v1229 = vpop.f32.mrf.mxu0
      %v1230 = vadd.f32 0.0, %v1229
      %1231 = vmatmul.bf16.gmra.mxu0 %v823
      %v1232 = vpop.f32.mrf.mxu0
      %v1233 = vadd.f32 0.0, %v1232
      %v1234 = vpop.f32.mrf.mxu0
      %v1235 = vadd.f32 0.0, %v1234
      %1236 = vmatmul.bf16.gmra.mxu0 %v828
      %v1237 = vpop.f32.mrf.mxu0
      %v1238 = vadd.f32 0.0, %v1237
      %v1239 = vpop.f32.mrf.mxu0
      %v1240 = vadd.f32 0.0, %v1239
      %1241 = vmatmul.bf16.gmra.mxu0 %v833
      %v1242 = vpop.f32.mrf.mxu0
      %v1243 = vadd.f32 0.0, %v1242
      %v1244 = vpop.f32.mrf.mxu0
      %v1245 = vadd.f32 0.0, %v1244
      %1246 = vmatmul.bf16.gmra.mxu0 %v838
      %v1247 = vpop.f32.mrf.mxu0
      %v1248 = vadd.f32 0.0, %v1247
      %v1249 = vpop.f32.mrf.mxu0
      %v1250 = vadd.f32 0.0, %v1249
      %1251 = vmatmul.bf16.gmra.mxu0 %v843
      %v1252 = vpop.f32.mrf.mxu0
      %v1253 = vadd.f32 0.0, %v1252
      %v1254 = vpop.f32.mrf.mxu0
      %v1255 = vadd.f32 0.0, %v1254
      %1256 = vmatmul.bf16.gmra.mxu0 %v848
      %v1257 = vpop.f32.mrf.mxu0
      %v1258 = vadd.f32 0.0, %v1257
      %v1259 = vpop.f32.mrf.mxu0
      %v1260 = vadd.f32 0.0, %v1259
      %1261 = vmatmul.bf16.gmra.mxu0 %v853
      %v1262 = vpop.f32.mrf.mxu0
      %v1263 = vadd.f32 0.0, %v1262
      %v1264 = vpop.f32.mrf.mxu0
      %v1265 = vadd.f32 0.0, %v1264
      %1266 = vmatmul.bf16.gmra.mxu0 %v858
      %v1267 = vpop.f32.mrf.mxu0
      %v1268 = vadd.f32 0.0, %v1267
      %v1269 = vpop.f32.mrf.mxu0
      %v1270 = vadd.f32 0.0, %v1269
      %1271 = vmatmul.bf16.gmra.mxu0 %v863
      %v1272 = vpop.f32.mrf.mxu0
      %v1273 = vadd.f32 0.0, %v1272
      %v1274 = vpop.f32.mrf.mxu0
      %v1275 = vadd.f32 0.0, %v1274
      %1276 = vmatmul.bf16.gmra.mxu0 %v868
      %v1277 = vpop.f32.mrf.mxu0
      %v1278 = vadd.f32 0.0, %v1277
      %v1279 = vpop.f32.mrf.mxu0
      %v1280 = vadd.f32 0.0, %v1279
      %1281 = vmatmul.bf16.gmra.mxu0 %v873
      %v1282 = vpop.f32.mrf.mxu0
      %v1283 = vadd.f32 0.0, %v1282
      %v1284 = vpop.f32.mrf.mxu0
      %v1285 = vadd.f32 0.0, %v1284
      %1286 = vmatmul.bf16.gmra.mxu0 %v878
      %v1287 = vpop.f32.mrf.mxu0
      %v1288 = vadd.f32 0.0, %v1287
      %v1289 = vpop.f32.mrf.mxu0
      %v1290 = vadd.f32 0.0, %v1289
      %1291 = vmatmul.bf16.gmra.mxu0 %v883
      %v1292 = vpop.f32.mrf.mxu0
      %v1293 = vadd.f32 0.0, %v1292
      %v1294 = vpop.f32.mrf.mxu0
      %v1295 = vadd.f32 0.0, %v1294
      %1296 = vdwg.mxu0
      %1297 = vmatpush.bf16.msra.mxu0 %v1143
      %1298 = vmatpush.bf16.msra.mxu0 %v1142
      %1299 = vmatpush.bf16.msra.mxu0 %v1141
      %1300 = vmatpush.bf16.msra.mxu0 %v1140
      %1301 = vmatpush.bf16.msra.mxu0 %v1139
      %1302 = vmatpush.bf16.msra.mxu0 %v1138
      %1303 = vmatpush.bf16.msra.mxu0 %v1137
      %1304 = vmatpush.bf16.msra.mxu0 %v1136
      %1305 = vmatmul.bf16.gmra.mxu0 %v809
      %v1306 = vpop.f32.mrf.mxu0
      %v1307 = vadd.f32 %v1218, %v1306
      %v1308 = vpop.f32.mrf.mxu0
      %v1309 = vadd.f32 %v1220, %v1308
      %1310 = vmatmul.bf16.gmra.mxu0 %v814
      %v1311 = vpop.f32.mrf.mxu0
      %v1312 = vadd.f32 %v1223, %v1311
      %v1313 = vpop.f32.mrf.mxu0
      %v1314 = vadd.f32 %v1225, %v1313
      %1315 = vmatmul.bf16.gmra.mxu0 %v819
      %v1316 = vpop.f32.mrf.mxu0
      %v1317 = vadd.f32 %v1228, %v1316
      %v1318 = vpop.f32.mrf.mxu0
      %v1319 = vadd.f32 %v1230, %v1318
      %1320 = vmatmul.bf16.gmra.mxu0 %v824
      %v1321 = vpop.f32.mrf.mxu0
      %v1322 = vadd.f32 %v1233, %v1321
      %v1323 = vpop.f32.mrf.mxu0
      %v1324 = vadd.f32 %v1235, %v1323
      %1325 = vmatmul.bf16.gmra.mxu0 %v829
      %v1326 = vpop.f32.mrf.mxu0
      %v1327 = vadd.f32 %v1238, %v1326
      %v1328 = vpop.f32.mrf.mxu0
      %v1329 = vadd.f32 %v1240, %v1328
      %1330 = vmatmul.bf16.gmra.mxu0 %v834
      %v1331 = vpop.f32.mrf.mxu0
      %v1332 = vadd.f32 %v1243, %v1331
      %v1333 = vpop.f32.mrf.mxu0
      %v1334 = vadd.f32 %v1245, %v1333
      %1335 = vmatmul.bf16.gmra.mxu0 %v839
      %v1336 = vpop.f32.mrf.mxu0
      %v1337 = vadd.f32 %v1248, %v1336
      %v1338 = vpop.f32.mrf.mxu0
      %v1339 = vadd.f32 %v1250, %v1338
      %1340 = vmatmul.bf16.gmra.mxu0 %v844
      %v1341 = vpop.f32.mrf.mxu0
      %v1342 = vadd.f32 %v1253, %v1341
      %v1343 = vpop.f32.mrf.mxu0
      %v1344 = vadd.f32 %v1255, %v1343
      %1345 = vmatmul.bf16.gmra.mxu0 %v849
      %v1346 = vpop.f32.mrf.mxu0
      %v1347 = vadd.f32 %v1258, %v1346
      %v1348 = vpop.f32.mrf.mxu0
      %v1349 = vadd.f32 %v1260, %v1348
      %1350 = vmatmul.bf16.gmra.mxu0 %v854
      %v1351 = vpop.f32.mrf.mxu0
      %v1352 = vadd.f32 %v1263, %v1351
      %v1353 = vpop.f32.mrf.mxu0
      %v1354 = vadd.f32 %v1265, %v1353
      %1355 = vmatmul.bf16.gmra.mxu0 %v859
      %v1356 = vpop.f32.mrf.mxu0
      %v1357 = vadd.f32 %v1268, %v1356
      %v1358 = vpop.f32.mrf.mxu0
      %v1359 = vadd.f32 %v1270, %v1358
      %1360 = vmatmul.bf16.gmra.mxu0 %v864
      %v1361 = vpop.f32.mrf.mxu0
      %v1362 = vadd.f32 %v1273, %v1361
      %v1363 = vpop.f32.mrf.mxu0
      %v1364 = vadd.f32 %v1275, %v1363
      %1365 = vmatmul.bf16.gmra.mxu0 %v869
      %v1366 = vpop.f32.mrf.mxu0
      %v1367 = vadd.f32 %v1278, %v1366
      %v1368 = vpop.f32.mrf.mxu0
      %v1369 = vadd.f32 %v1280, %v1368
      %1370 = vmatmul.bf16.gmra.mxu0 %v874
      %v1371 = vpop.f32.mrf.mxu0
      %v1372 = vadd.f32 %v1283, %v1371
      %v1373 = vpop.f32.mrf.mxu0
      %v1374 = vadd.f32 %v1285, %v1373
      %1375 = vmatmul.bf16.gmra.mxu0 %v879
      %v1376 = vpop.f32.mrf.mxu0
      %v1377 = vadd.f32 %v1288, %v1376
      %v1378 = vpop.f32.mrf.mxu0
      %v1379 = vadd.f32 %v1290, %v1378
      %1380 = vmatmul.bf16.gmra.mxu0 %v884
      %v1381 = vpop.f32.mrf.mxu0
      %v1382 = vadd.f32 %v1293, %v1381
      %v1383 = vpop.f32.mrf.mxu0
      %v1384 = vadd.f32 %v1295, %v1383
      %1385 = vdwg.mxu0
      %1386 = vmatpush.bf16.msra.mxu0 %v1151
      %1387 = vmatpush.bf16.msra.mxu0 %v1150
      %1388 = vmatpush.bf16.msra.mxu0 %v1149
      %1389 = vmatpush.bf16.msra.mxu0 %v1148
      %1390 = vmatpush.bf16.msra.mxu0 %v1147
      %1391 = vmatpush.bf16.msra.mxu0 %v1146
      %1392 = vmatpush.bf16.msra.mxu0 %v1145
      %1393 = vmatpush.bf16.msra.mxu0 %v1144
      %1394 = vmatmul.bf16.gmra.mxu0 %v810
      %v1395 = vpop.f32.mrf.mxu0
      %v1396 = vadd.f32 %v1307, %v1395
      %v1397 = vpop.f32.mrf.mxu0
      %v1398 = vadd.f32 %v1309, %v1397
      %1399 = vmatmul.bf16.gmra.mxu0 %v815
      %v1400 = vpop.f32.mrf.mxu0
      %v1401 = vadd.f32 %v1312, %v1400
      %v1402 = vpop.f32.mrf.mxu0
      %v1403 = vadd.f32 %v1314, %v1402
      %1404 = vmatmul.bf16.gmra.mxu0 %v820
      %v1405 = vpop.f32.mrf.mxu0
      %v1406 = vadd.f32 %v1317, %v1405
      %v1407 = vpop.f32.mrf.mxu0
      %v1408 = vadd.f32 %v1319, %v1407
      %1409 = vmatmul.bf16.gmra.mxu0 %v825
      %v1410 = vpop.f32.mrf.mxu0
      %v1411 = vadd.f32 %v1322, %v1410
      %v1412 = vpop.f32.mrf.mxu0
      %v1413 = vadd.f32 %v1324, %v1412
      %1414 = vmatmul.bf16.gmra.mxu0 %v830
      %v1415 = vpop.f32.mrf.mxu0
      %v1416 = vadd.f32 %v1327, %v1415
      %v1417 = vpop.f32.mrf.mxu0
      %v1418 = vadd.f32 %v1329, %v1417
      %1419 = vmatmul.bf16.gmra.mxu0 %v835
      %v1420 = vpop.f32.mrf.mxu0
      %v1421 = vadd.f32 %v1332, %v1420
      %v1422 = vpop.f32.mrf.mxu0
      %v1423 = vadd.f32 %v1334, %v1422
      %1424 = vmatmul.bf16.gmra.mxu0 %v840
      %v1425 = vpop.f32.mrf.mxu0
      %v1426 = vadd.f32 %v1337, %v1425
      %v1427 = vpop.f32.mrf.mxu0
      %v1428 = vadd.f32 %v1339, %v1427
      %1429 = vmatmul.bf16.gmra.mxu0 %v845
      %v1430 = vpop.f32.mrf.mxu0
      %v1431 = vadd.f32 %v1342, %v1430
      %v1432 = vpop.f32.mrf.mxu0
      %v1433 = vadd.f32 %v1344, %v1432
      %1434 = vmatmul.bf16.gmra.mxu0 %v850
      %v1435 = vpop.f32.mrf.mxu0
      %v1436 = vadd.f32 %v1347, %v1435
      %v1437 = vpop.f32.mrf.mxu0
      %v1438 = vadd.f32 %v1349, %v1437
      %1439 = vmatmul.bf16.gmra.mxu0 %v855
      %v1440 = vpop.f32.mrf.mxu0
      %v1441 = vadd.f32 %v1352, %v1440
      %v1442 = vpop.f32.mrf.mxu0
      %v1443 = vadd.f32 %v1354, %v1442
      %1444 = vmatmul.bf16.gmra.mxu0 %v860
      %v1445 = vpop.f32.mrf.mxu0
      %v1446 = vadd.f32 %v1357, %v1445
      %v1447 = vpop.f32.mrf.mxu0
      %v1448 = vadd.f32 %v1359, %v1447
      %1449 = vmatmul.bf16.gmra.mxu0 %v865
      %v1450 = vpop.f32.mrf.mxu0
      %v1451 = vadd.f32 %v1362, %v1450
      %v1452 = vpop.f32.mrf.mxu0
      %v1453 = vadd.f32 %v1364, %v1452
      %1454 = vmatmul.bf16.gmra.mxu0 %v870
      %v1455 = vpop.f32.mrf.mxu0
      %v1456 = vadd.f32 %v1367, %v1455
      %v1457 = vpop.f32.mrf.mxu0
      %v1458 = vadd.f32 %v1369, %v1457
      %1459 = vmatmul.bf16.gmra.mxu0 %v875
      %v1460 = vpop.f32.mrf.mxu0
      %v1461 = vadd.f32 %v1372, %v1460
      %v1462 = vpop.f32.mrf.mxu0
      %v1463 = vadd.f32 %v1374, %v1462
      %1464 = vmatmul.bf16.gmra.mxu0 %v880
      %v1465 = vpop.f32.mrf.mxu0
      %v1466 = vadd.f32 %v1377, %v1465
      %v1467 = vpop.f32.mrf.mxu0
      %v1468 = vadd.f32 %v1379, %v1467
      %1469 = vmatmul.bf16.gmra.mxu0 %v885
      %v1470 = vpop.f32.mrf.mxu0
      %v1471 = vadd.f32 %v1382, %v1470
      %v1472 = vpop.f32.mrf.mxu0
      %v1473 = vadd.f32 %v1384, %v1472
      %1474 = vdwg.mxu0
      %1475 = vmatpush.bf16.msra.mxu0 %v1159
      %1476 = vmatpush.bf16.msra.mxu0 %v1158
      %1477 = vmatpush.bf16.msra.mxu0 %v1157
      %1478 = vmatpush.bf16.msra.mxu0 %v1156
      %1479 = vmatpush.bf16.msra.mxu0 %v1155
      %1480 = vmatpush.bf16.msra.mxu0 %v1154
      %1481 = vmatpush.bf16.msra.mxu0 %v1153
      %1482 = vmatpush.bf16.msra.mxu0 %v1152
      %1483 = vmatmul.bf16.gmra.mxu0 %v811
      %v1484 = vpop.f32.mrf.mxu0
      %v1485 = vadd.f32 %v1396, %v1484
      %v1486 = vpop.f32.mrf.mxu0
      %v1487 = vadd.f32 %v1398, %v1486
      %1488 = vmatmul.bf16.gmra.mxu0 %v816
      %v1489 = vpop.f32.mrf.mxu0
      %v1490 = vadd.f32 %v1401, %v1489
      %v1491 = vpop.f32.mrf.mxu0
      %v1492 = vadd.f32 %v1403, %v1491
      %1493 = vmatmul.bf16.gmra.mxu0 %v821
      %v1494 = vpop.f32.mrf.mxu0
      %v1495 = vadd.f32 %v1406, %v1494
      %v1496 = vpop.f32.mrf.mxu0
      %v1497 = vadd.f32 %v1408, %v1496
      %1498 = vmatmul.bf16.gmra.mxu0 %v826
      %v1499 = vpop.f32.mrf.mxu0
      %v1500 = vadd.f32 %v1411, %v1499
      %v1501 = vpop.f32.mrf.mxu0
      %v1502 = vadd.f32 %v1413, %v1501
      %1503 = vmatmul.bf16.gmra.mxu0 %v831
      %v1504 = vpop.f32.mrf.mxu0
      %v1505 = vadd.f32 %v1416, %v1504
      %v1506 = vpop.f32.mrf.mxu0
      %v1507 = vadd.f32 %v1418, %v1506
      %1508 = vmatmul.bf16.gmra.mxu0 %v836
      %v1509 = vpop.f32.mrf.mxu0
      %v1510 = vadd.f32 %v1421, %v1509
      %v1511 = vpop.f32.mrf.mxu0
      %v1512 = vadd.f32 %v1423, %v1511
      %1513 = vmatmul.bf16.gmra.mxu0 %v841
      %v1514 = vpop.f32.mrf.mxu0
      %v1515 = vadd.f32 %v1426, %v1514
      %v1516 = vpop.f32.mrf.mxu0
      %v1517 = vadd.f32 %v1428, %v1516
      %1518 = vmatmul.bf16.gmra.mxu0 %v846
      %v1519 = vpop.f32.mrf.mxu0
      %v1520 = vadd.f32 %v1431, %v1519
      %v1521 = vpop.f32.mrf.mxu0
      %v1522 = vadd.f32 %v1433, %v1521
      %1523 = vmatmul.bf16.gmra.mxu0 %v851
      %v1524 = vpop.f32.mrf.mxu0
      %v1525 = vadd.f32 %v1436, %v1524
      %v1526 = vpop.f32.mrf.mxu0
      %v1527 = vadd.f32 %v1438, %v1526
      %1528 = vmatmul.bf16.gmra.mxu0 %v856
      %v1529 = vpop.f32.mrf.mxu0
      %v1530 = vadd.f32 %v1441, %v1529
      %v1531 = vpop.f32.mrf.mxu0
      %v1532 = vadd.f32 %v1443, %v1531
      %1533 = vmatmul.bf16.gmra.mxu0 %v861
      %v1534 = vpop.f32.mrf.mxu0
      %v1535 = vadd.f32 %v1446, %v1534
      %v1536 = vpop.f32.mrf.mxu0
      %v1537 = vadd.f32 %v1448, %v1536
      %1538 = vmatmul.bf16.gmra.mxu0 %v866
      %v1539 = vpop.f32.mrf.mxu0
      %v1540 = vadd.f32 %v1451, %v1539
      %v1541 = vpop.f32.mrf.mxu0
      %v1542 = vadd.f32 %v1453, %v1541
      %1543 = vmatmul.bf16.gmra.mxu0 %v871
      %v1544 = vpop.f32.mrf.mxu0
      %v1545 = vadd.f32 %v1456, %v1544
      %v1546 = vpop.f32.mrf.mxu0
      %v1547 = vadd.f32 %v1458, %v1546
      %1548 = vmatmul.bf16.gmra.mxu0 %v876
      %v1549 = vpop.f32.mrf.mxu0
      %v1550 = vadd.f32 %v1461, %v1549
      %v1551 = vpop.f32.mrf.mxu0
      %v1552 = vadd.f32 %v1463, %v1551
      %1553 = vmatmul.bf16.gmra.mxu0 %v881
      %v1554 = vpop.f32.mrf.mxu0
      %v1555 = vadd.f32 %v1466, %v1554
      %v1556 = vpop.f32.mrf.mxu0
      %v1557 = vadd.f32 %v1468, %v1556
      %1558 = vmatmul.bf16.gmra.mxu0 %v886
      %v1559 = vpop.f32.mrf.mxu0
      %v1560 = vadd.f32 %v1471, %v1559
      %v1561 = vpop.f32.mrf.mxu0
      %v1562 = vadd.f32 %v1473, %v1561
      %1563 = vdwg.mxu0
      %1564 = vmatpush.bf16.msra.mxu0 %v1167
      %1565 = vmatpush.bf16.msra.mxu0 %v1166
      %1566 = vmatpush.bf16.msra.mxu0 %v1165
      %1567 = vmatpush.bf16.msra.mxu0 %v1164
      %1568 = vmatpush.bf16.msra.mxu0 %v1163
      %1569 = vmatpush.bf16.msra.mxu0 %v1162
      %1570 = vmatpush.bf16.msra.mxu0 %v1161
      %1571 = vmatpush.bf16.msra.mxu0 %v1160
      %1572 = vmatmul.bf16.gmra.mxu0 %v812
      %v1573 = vpop.f32.mrf.mxu0
      %v1574 = vadd.f32 %v1485, %v1573
      %v1575 = vpop.f32.mrf.mxu0
      %v1576 = vadd.f32 %v1487, %v1575
      %1577 = vmatmul.bf16.gmra.mxu0 %v817
      %v1578 = vpop.f32.mrf.mxu0
      %v1579 = vadd.f32 %v1490, %v1578
      %v1580 = vpop.f32.mrf.mxu0
      %v1581 = vadd.f32 %v1492, %v1580
      %1582 = vmatmul.bf16.gmra.mxu0 %v822
      %v1583 = vpop.f32.mrf.mxu0
      %v1584 = vadd.f32 %v1495, %v1583
      %v1585 = vpop.f32.mrf.mxu0
      %v1586 = vadd.f32 %v1497, %v1585
      %1587 = vmatmul.bf16.gmra.mxu0 %v827
      %v1588 = vpop.f32.mrf.mxu0
      %v1589 = vadd.f32 %v1500, %v1588
      %v1590 = vpop.f32.mrf.mxu0
      %v1591 = vadd.f32 %v1502, %v1590
      %1592 = vmatmul.bf16.gmra.mxu0 %v832
      %v1593 = vpop.f32.mrf.mxu0
      %v1594 = vadd.f32 %v1505, %v1593
      %v1595 = vpop.f32.mrf.mxu0
      %v1596 = vadd.f32 %v1507, %v1595
      %1597 = vmatmul.bf16.gmra.mxu0 %v837
      %v1598 = vpop.f32.mrf.mxu0
      %v1599 = vadd.f32 %v1510, %v1598
      %v1600 = vpop.f32.mrf.mxu0
      %v1601 = vadd.f32 %v1512, %v1600
      %1602 = vmatmul.bf16.gmra.mxu0 %v842
      %v1603 = vpop.f32.mrf.mxu0
      %v1604 = vadd.f32 %v1515, %v1603
      %v1605 = vpop.f32.mrf.mxu0
      %v1606 = vadd.f32 %v1517, %v1605
      %1607 = vmatmul.bf16.gmra.mxu0 %v847
      %v1608 = vpop.f32.mrf.mxu0
      %v1609 = vadd.f32 %v1520, %v1608
      %v1610 = vpop.f32.mrf.mxu0
      %v1611 = vadd.f32 %v1522, %v1610
      %1612 = vmatmul.bf16.gmra.mxu0 %v852
      %v1613 = vpop.f32.mrf.mxu0
      %v1614 = vadd.f32 %v1525, %v1613
      %v1615 = vpop.f32.mrf.mxu0
      %v1616 = vadd.f32 %v1527, %v1615
      %1617 = vmatmul.bf16.gmra.mxu0 %v857
      %v1618 = vpop.f32.mrf.mxu0
      %v1619 = vadd.f32 %v1530, %v1618
      %v1620 = vpop.f32.mrf.mxu0
      %v1621 = vadd.f32 %v1532, %v1620
      %1622 = vmatmul.bf16.gmra.mxu0 %v862
      %v1623 = vpop.f32.mrf.mxu0
      %v1624 = vadd.f32 %v1535, %v1623
      %v1625 = vpop.f32.mrf.mxu0
      %v1626 = vadd.f32 %v1537, %v1625
      %1627 = vmatmul.bf16.gmra.mxu0 %v867
      %v1628 = vpop.f32.mrf.mxu0
      %v1629 = vadd.f32 %v1540, %v1628
      %v1630 = vpop.f32.mrf.mxu0
      %v1631 = vadd.f32 %v1542, %v1630
      %1632 = vmatmul.bf16.gmra.mxu0 %v872
      %v1633 = vpop.f32.mrf.mxu0
      %v1634 = vadd.f32 %v1545, %v1633
      %v1635 = vpop.f32.mrf.mxu0
      %v1636 = vadd.f32 %v1547, %v1635
      %1637 = vmatmul.bf16.gmra.mxu0 %v877
      %v1638 = vpop.f32.mrf.mxu0
      %v1639 = vadd.f32 %v1550, %v1638
      %v1640 = vpop.f32.mrf.mxu0
      %v1641 = vadd.f32 %v1552, %v1640
      %1642 = vmatmul.bf16.gmra.mxu0 %v882
      %v1643 = vpop.f32.mrf.mxu0
      %v1644 = vadd.f32 %v1555, %v1643
      %v1645 = vpop.f32.mrf.mxu0
      %v1646 = vadd.f32 %v1557, %v1645
      %1647 = vmatmul.bf16.gmra.mxu0 %v887
      %v1648 = vpop.f32.mrf.mxu0
      %v1649 = vadd.f32 %v1560, %v1648
      %v1650 = vpop.f32.mrf.mxu0
      %v1651 = vadd.f32 %v1562, %v1650
      %1652 = vdwg.mxu0
      %v1653 = vadd.f32 %v344, %v1574
      %v1654 = vadd.f32 %v345, %v1576
      %v1655 = vadd.f32 %v346, %v1579
      %v1656 = vadd.f32 %v347, %v1581
      %v1657 = vadd.f32 %v348, %v1584
      %v1658 = vadd.f32 %v349, %v1586
      %v1659 = vadd.f32 %v350, %v1589
      %v1660 = vadd.f32 %v351, %v1591
      %v1661 = vadd.f32 %v352, %v1594
      %v1662 = vadd.f32 %v353, %v1596
      %v1663 = vadd.f32 %v354, %v1599
      %v1664 = vadd.f32 %v355, %v1601
      %v1665 = vadd.f32 %v356, %v1604
      %v1666 = vadd.f32 %v357, %v1606
      %v1667 = vadd.f32 %v358, %v1609
      %v1668 = vadd.f32 %v359, %v1611
      %v1669 = vadd.f32 %v360, %v1614
      %v1670 = vadd.f32 %v361, %v1616
      %v1671 = vadd.f32 %v362, %v1619
      %v1672 = vadd.f32 %v363, %v1621
      %v1673 = vadd.f32 %v364, %v1624
      %v1674 = vadd.f32 %v365, %v1626
      %v1675 = vadd.f32 %v366, %v1629
      %v1676 = vadd.f32 %v367, %v1631
      %v1677 = vadd.f32 %v368, %v1634
      %v1678 = vadd.f32 %v369, %v1636
      %v1679 = vadd.f32 %v370, %v1639
      %v1680 = vadd.f32 %v371, %v1641
      %v1681 = vadd.f32 %v372, %v1644
      %v1682 = vadd.f32 %v373, %v1646
      %v1683 = vadd.f32 %v374, %v1649
      %v1684 = vadd.f32 %v375, %v1651
      %1685 = vst [vmem:[#allocation2] sm:$0xff] %v1653
      %1686 = vst [vmem:[#allocation2 + $0x8] sm:$0xff] %v1654
      %1687 = vst [vmem:[#allocation2 + $0x10] sm:$0xff] %v1655
      %1688 = vst [vmem:[#allocation2 + $0x18] sm:$0xff] %v1656
      %1689 = vst [vmem:[#allocation2 + $0x20] sm:$0xff] %v1657
      %1690 = vst [vmem:[#allocation2 + $0x28] sm:$0xff] %v1658
      %1691 = vst [vmem:[#allocation2 + $0x30] sm:$0xff] %v1659
      %1692 = vst [vmem:[#allocation2 + $0x38] sm:$0xff] %v1660
      %1693 = vst [vmem:[#allocation2 + $0x40] sm:$0xff] %v1661
      %1694 = vst [vmem:[#allocation2 + $0x48] sm:$0xff] %v1662
      %1695 = vst [vmem:[#allocation2 + $0x50] sm:$0xff] %v1663
      %1696 = vst [vmem:[#allocation2 + $0x58] sm:$0xff] %v1664
      %1697 = vst [vmem:[#allocation2 + $0x60] sm:$0xff] %v1665
      %1698 = vst [vmem:[#allocation2 + $0x68] sm:$0xff] %v1666
      %1699 = vst [vmem:[#allocation2 + $0x70] sm:$0xff] %v1667
      %1700 = vst [vmem:[#allocation2 + $0x78] sm:$0xff] %v1668
      %1701 = vst [vmem:[#allocation2 + $0x80] sm:$0xff] %v1669
      %1702 = vst [vmem:[#allocation2 + $0x88] sm:$0xff] %v1670
      %1703 = vst [vmem:[#allocation2 + $0x90] sm:$0xff] %v1671
      %1704 = vst [vmem:[#allocation2 + $0x98] sm:$0xff] %v1672
      %1705 = vst [vmem:[#allocation2 + $0xa0] sm:$0xff] %v1673
      %1706 = vst [vmem:[#allocation2 + $0xa8] sm:$0xff] %v1674
      %1707 = vst [vmem:[#allocation2 + $0xb0] sm:$0xff] %v1675
      %1708 = vst [vmem:[#allocation2 + $0xb8] sm:$0xff] %v1676
      %1709 = vst [vmem:[#allocation2 + $0xc0] sm:$0xff] %v1677
      %1710 = vst [vmem:[#allocation2 + $0xc8] sm:$0xff] %v1678
      %1711 = vst [vmem:[#allocation2 + $0xd0] sm:$0xff] %v1679
      %1712 = vst [vmem:[#allocation2 + $0xd8] sm:$0xff] %v1680
      %1713 = vst [vmem:[#allocation2 + $0xe0] sm:$0xff] %v1681
      %1714 = vst [vmem:[#allocation2 + $0xe8] sm:$0xff] %v1682
      %1715 = vst [vmem:[#allocation2 + $0xf0] sm:$0xff] %v1683
      %1716 = vst [vmem:[#allocation2 + $0xf8] sm:$0xff] %v1684
      // Predicated region
      $region41: #{stem_forward.4} parent=35 // pred_check
        %p1717 = pneg %p308
      $region42: #{stem_forward.4} parent=35 // pred_check_branch
        %1719 = sbr.rel (%p1717) target = $region44
      $region43: #{stem_forward.4} parent=35 // pred_region
        %v1720 = vld [vmem:[#allocation2] sm:$0xff]
        %v1721 = vld [vmem:[#allocation2 + $0x8] sm:$0xff]
        %v1722 = vld [vmem:[#allocation2 + $0x10] sm:$0xff]
        %v1723 = vld [vmem:[#allocation2 + $0x18] sm:$0xff]
        %v1724 = vld [vmem:[#allocation2 + $0x20] sm:$0xff]
        %v1725 = vld [vmem:[#allocation2 + $0x28] sm:$0xff]
        %v1726 = vld [vmem:[#allocation2 + $0x30] sm:$0xff]
        %v1727 = vld [vmem:[#allocation2 + $0x38] sm:$0xff]
        %v1728 = vld [vmem:[#allocation2 + $0x40] sm:$0xff]
        %v1729 = vld [vmem:[#allocation2 + $0x48] sm:$0xff]
        %v1730 = vld [vmem:[#allocation2 + $0x50] sm:$0xff]
        %v1731 = vld [vmem:[#allocation2 + $0x58] sm:$0xff]
        %v1732 = vld [vmem:[#allocation2 + $0x60] sm:$0xff]
        %v1733 = vld [vmem:[#allocation2 + $0x68] sm:$0xff]
        %v1734 = vld [vmem:[#allocation2 + $0x70] sm:$0xff]
        %v1735 = vld [vmem:[#allocation2 + $0x78] sm:$0xff]
        %v1736 = vld [vmem:[#allocation2 + $0x80] sm:$0xff]
        %v1737 = vld [vmem:[#allocation2 + $0x88] sm:$0xff]
        %v1738 = vld [vmem:[#allocation2 + $0x90] sm:$0xff]
        %v1739 = vld [vmem:[#allocation2 + $0x98] sm:$0xff]
        %v1740 = vld [vmem:[#allocation2 + $0xa0] sm:$0xff]
        %v1741 = vld [vmem:[#allocation2 + $0xa8] sm:$0xff]
        %v1742 = vld [vmem:[#allocation2 + $0xb0] sm:$0xff]
        %v1743 = vld [vmem:[#allocation2 + $0xb8] sm:$0xff]
        %v1744 = vld [vmem:[#allocation2 + $0xc0] sm:$0xff]
        %v1745 = vld [vmem:[#allocation2 + $0xc8] sm:$0xff]
        %v1746 = vld [vmem:[#allocation2 + $0xd0] sm:$0xff]
        %v1747 = vld [vmem:[#allocation2 + $0xd8] sm:$0xff]
        %v1748 = vld [vmem:[#allocation2 + $0xe0] sm:$0xff]
        %v1749 = vld [vmem:[#allocation2 + $0xe8] sm:$0xff]
        %v1750 = vld [vmem:[#allocation2 + $0xf0] sm:$0xff]
        %v1751 = vld [vmem:[#allocation2 + $0xf8] sm:$0xff]
        %v1752 = vld [vmem:[%s295] sm:$0x1]
        %v1754 = vperm.slane %v1752, 0
        %v1756 = vmul.f32 %v1720, %v1754
        %v1757 = vmul.f32 %v1721, %v1754
        %v1758 = vmul.f32 %v1722, %v1754
        %v1759 = vmul.f32 %v1723, %v1754
        %v1760 = vmul.f32 %v1724, %v1754
        %v1761 = vmul.f32 %v1725, %v1754
        %v1762 = vmul.f32 %v1726, %v1754
        %v1763 = vmul.f32 %v1727, %v1754
        %v1764 = vmul.f32 %v1728, %v1754
        %v1765 = vmul.f32 %v1729, %v1754
        %v1766 = vmul.f32 %v1730, %v1754
        %v1767 = vmul.f32 %v1731, %v1754
        %v1768 = vmul.f32 %v1732, %v1754
        %v1769 = vmul.f32 %v1733, %v1754
        %v1770 = vmul.f32 %v1734, %v1754
        %v1771 = vmul.f32 %v1735, %v1754
        %v1772 = vmul.f32 %v1736, %v1754
        %v1773 = vmul.f32 %v1737, %v1754
        %v1774 = vmul.f32 %v1738, %v1754
        %v1775 = vmul.f32 %v1739, %v1754
        %v1776 = vmul.f32 %v1740, %v1754
        %v1777 = vmul.f32 %v1741, %v1754
        %v1778 = vmul.f32 %v1742, %v1754
        %v1779 = vmul.f32 %v1743, %v1754
        %v1780 = vmul.f32 %v1744, %v1754
        %v1781 = vmul.f32 %v1745, %v1754
        %v1782 = vmul.f32 %v1746, %v1754
        %v1783 = vmul.f32 %v1747, %v1754
        %v1784 = vmul.f32 %v1748, %v1754
        %v1785 = vmul.f32 %v1749, %v1754
        %v1786 = vmul.f32 %v1750, %v1754
        %v1787 = vmul.f32 %v1751, %v1754
        %v1788 = vld [vmem:[%s298] sm:$0x1]
        %v1790 = vperm.slane %v1788, 0
        %v1792 = vadd.f32 %v1756, %v1790
        %v1793 = vadd.f32 %v1757, %v1790
        %v1794 = vadd.f32 %v1758, %v1790
        %v1795 = vadd.f32 %v1759, %v1790
        %v1796 = vadd.f32 %v1760, %v1790
        %v1797 = vadd.f32 %v1761, %v1790
        %v1798 = vadd.f32 %v1762, %v1790
        %v1799 = vadd.f32 %v1763, %v1790
        %v1800 = vadd.f32 %v1764, %v1790
        %v1801 = vadd.f32 %v1765, %v1790
        %v1802 = vadd.f32 %v1766, %v1790
        %v1803 = vadd.f32 %v1767, %v1790
        %v1804 = vadd.f32 %v1768, %v1790
        %v1805 = vadd.f32 %v1769, %v1790
        %v1806 = vadd.f32 %v1770, %v1790
        %v1807 = vadd.f32 %v1771, %v1790
        %v1808 = vadd.f32 %v1772, %v1790
        %v1809 = vadd.f32 %v1773, %v1790
        %v1810 = vadd.f32 %v1774, %v1790
        %v1811 = vadd.f32 %v1775, %v1790
        %v1812 = vadd.f32 %v1776, %v1790
        %v1813 = vadd.f32 %v1777, %v1790
        %v1814 = vadd.f32 %v1778, %v1790
        %v1815 = vadd.f32 %v1779, %v1790
        %v1816 = vadd.f32 %v1780, %v1790
        %v1817 = vadd.f32 %v1781, %v1790
        %v1818 = vadd.f32 %v1782, %v1790
        %v1819 = vadd.f32 %v1783, %v1790
        %v1820 = vadd.f32 %v1784, %v1790
        %v1821 = vadd.f32 %v1785, %v1790
        %v1822 = vadd.f32 %v1786, %v1790
        %v1823 = vadd.f32 %v1787, %v1790
        %v1824 = vmax.f32 %v1792, 0.0
        %v1825 = vmax.f32 %v1793, 0.0
        %v1826 = vmax.f32 %v1794, 0.0
        %v1827 = vmax.f32 %v1795, 0.0
        %v1828 = vmax.f32 %v1796, 0.0
        %v1829 = vmax.f32 %v1797, 0.0
        %v1830 = vmax.f32 %v1798, 0.0
        %v1831 = vmax.f32 %v1799, 0.0
        %v1832 = vmax.f32 %v1800, 0.0
        %v1833 = vmax.f32 %v1801, 0.0
        %v1834 = vmax.f32 %v1802, 0.0
        %v1835 = vmax.f32 %v1803, 0.0
        %v1836 = vmax.f32 %v1804, 0.0
        %v1837 = vmax.f32 %v1805, 0.0
        %v1838 = vmax.f32 %v1806, 0.0
        %v1839 = vmax.f32 %v1807, 0.0
        %v1840 = vmax.f32 %v1808, 0.0
        %v1841 = vmax.f32 %v1809, 0.0
        %v1842 = vmax.f32 %v1810, 0.0
        %v1843 = vmax.f32 %v1811, 0.0
        %v1844 = vmax.f32 %v1812, 0.0
        %v1845 = vmax.f32 %v1813, 0.0
        %v1846 = vmax.f32 %v1814, 0.0
        %v1847 = vmax.f32 %v1815, 0.0
        %v1848 = vmax.f32 %v1816, 0.0
        %v1849 = vmax.f32 %v1817, 0.0
        %v1850 = vmax.f32 %v1818, 0.0
        %v1851 = vmax.f32 %v1819, 0.0
        %v1852 = vmax.f32 %v1820, 0.0
        %v1853 = vmax.f32 %v1821, 0.0
        %v1854 = vmax.f32 %v1822, 0.0
        %v1855 = vmax.f32 %v1823, 0.0
        %v1856 = vpack.c.bf16 %v1824, %v1824
        %v1857 = vpack.c.bf16 %v1825, %v1825
        %v1858 = vpack.c.bf16 %v1826, %v1826
        %v1859 = vpack.c.bf16 %v1827, %v1827
        %v1860 = vpack.c.bf16 %v1828, %v1828
        %v1861 = vpack.c.bf16 %v1829, %v1829
        %v1862 = vpack.c.bf16 %v1830, %v1830
        %v1863 = vpack.c.bf16 %v1831, %v1831
        %v1864 = vpack.c.bf16 %v1832, %v1832
        %v1865 = vpack.c.bf16 %v1833, %v1833
        %v1866 = vpack.c.bf16 %v1834, %v1834
        %v1867 = vpack.c.bf16 %v1835, %v1835
        %v1868 = vpack.c.bf16 %v1836, %v1836
        %v1869 = vpack.c.bf16 %v1837, %v1837
        %v1870 = vpack.c.bf16 %v1838, %v1838
        %v1871 = vpack.c.bf16 %v1839, %v1839
        %v1872 = vpack.c.bf16 %v1840, %v1840
        %v1873 = vpack.c.bf16 %v1841, %v1841
        %v1874 = vpack.c.bf16 %v1842, %v1842
        %v1875 = vpack.c.bf16 %v1843, %v1843
        %v1876 = vpack.c.bf16 %v1844, %v1844
        %v1877 = vpack.c.bf16 %v1845, %v1845
        %v1878 = vpack.c.bf16 %v1846, %v1846
        %v1879 = vpack.c.bf16 %v1847, %v1847
        %v1880 = vpack.c.bf16 %v1848, %v1848
        %v1881 = vpack.c.bf16 %v1849, %v1849
        %v1882 = vpack.c.bf16 %v1850, %v1850
        %v1883 = vpack.c.bf16 %v1851, %v1851
        %v1884 = vpack.c.bf16 %v1852, %v1852
        %v1885 = vpack.c.bf16 %v1853, %v1853
        %v1886 = vpack.c.bf16 %v1854, %v1854
        %v1887 = vpack.c.bf16 %v1855, %v1855
        %1888 = vst [vmem:[%s306] sm:$0xf] %v1856
        %1889 = vst [vmem:[%s306 + $0x4] sm:$0xf] %v1857
        %1890 = vst [vmem:[%s306 + $0x8] sm:$0xf] %v1858
        %1891 = vst [vmem:[%s306 + $0xc] sm:$0xf] %v1859
        %1892 = vst [vmem:[%s306 + $0x10] sm:$0xf] %v1860
        %1893 = vst [vmem:[%s306 + $0x14] sm:$0xf] %v1861
        %1894 = vst [vmem:[%s306 + $0x18] sm:$0xf] %v1862
        %1895 = vst [vmem:[%s306 + $0x1c] sm:$0xf] %v1863
        %1896 = vst [vmem:[%s306 + $0x20] sm:$0xf] %v1864
        %1897 = vst [vmem:[%s306 + $0x24] sm:$0xf] %v1865
        %1898 = vst [vmem:[%s306 + $0x28] sm:$0xf] %v1866
        %1899 = vst [vmem:[%s306 + $0x2c] sm:$0xf] %v1867
        %1900 = vst [vmem:[%s306 + $0x30] sm:$0xf] %v1868
        %1901 = vst [vmem:[%s306 + $0x34] sm:$0xf] %v1869
        %1902 = vst [vmem:[%s306 + $0x38] sm:$0xf] %v1870
        %1903 = vst [vmem:[%s306 + $0x3c] sm:$0xf] %v1871
        %1904 = vst [vmem:[%s306 + $0x40] sm:$0xf] %v1872
        %1905 = vst [vmem:[%s306 + $0x44] sm:$0xf] %v1873
        %1906 = vst [vmem:[%s306 + $0x48] sm:$0xf] %v1874
        %1907 = vst [vmem:[%s306 + $0x4c] sm:$0xf] %v1875
        %1908 = vst [vmem:[%s306 + $0x50] sm:$0xf] %v1876
        %1909 = vst [vmem:[%s306 + $0x54] sm:$0xf] %v1877
        %1910 = vst [vmem:[%s306 + $0x58] sm:$0xf] %v1878
        %1911 = vst [vmem:[%s306 + $0x5c] sm:$0xf] %v1879
        %1912 = vst [vmem:[%s306 + $0x60] sm:$0xf] %v1880
        %1913 = vst [vmem:[%s306 + $0x64] sm:$0xf] %v1881
        %1914 = vst [vmem:[%s306 + $0x68] sm:$0xf] %v1882
        %1915 = vst [vmem:[%s306 + $0x6c] sm:$0xf] %v1883
        %1916 = vst [vmem:[%s306 + $0x70] sm:$0xf] %v1884
        %1917 = vst [vmem:[%s306 + $0x74] sm:$0xf] %v1885
        %1918 = vst [vmem:[%s306 + $0x78] sm:$0xf] %v1886
        %1919 = vst [vmem:[%s306 + $0x7c] sm:$0xf] %v1887
      $region44: #{stem_forward.4} parent=35 // pred_fallthru
        _
      %s1920 = smul.u32 32, %s20
      %p1921 = scmp.lt.s32.totalorder %s1920, 511
      %s1922 = scalar_select %p1921, %s1920, 511
      %p1923 = scmp.lt.s32.totalorder %s21, 0
      %s1924 = scalar_select %p1923, %s21, 0
      %s1925 = sadd.s32 %s1924, %s1922
      %s1926 = smul.addr %s1925, 4
      %s1927 = scalar_lea.vmem %s4, %s1926
      // Predicated region
      $region45: #{stem_forward.4} parent=35 // pred_check
        %p1928 = pneg %p162
      $region46: #{stem_forward.4} parent=35 // pred_check_branch
        %1930 = sbr.rel (%p1928) target = $region48
      $region47: #{stem_forward.4} parent=35 // pred_region
        %s1931 = smul.u32 32, %s20
      $region48: #{stem_forward.4} parent=35 // pred_fallthru
        _
    $region36: #{stem_forward.4} parent=5 // pred_fallthru
      _
    %p1932 = scmp.le.s32.totalorder 2, %s10
    // Predicated region
    $region49: #{stem_forward.4} parent=5 // pred_check
      %p1933 = pneg %p1932
    $region50: #{stem_forward.4} parent=5 // pred_check_branch
      %1935 = sbr.rel (%p1933) target = $region52
    $region51: #{stem_forward.4} parent=5 // pred_region
      %s1936 = ssub.s32 %s10, 2
      // Predicated region
      $region53: #{stem_forward.4} parent=51 // pred_check
        %p1937 = pneg %p168
      $region54: #{stem_forward.4} parent=51 // pred_check_branch
        %1939 = sbr.rel (%p1937) target = $region56
      $region55: #{stem_forward.4} parent=51 // pred_region
        %s1940 = smul.u32 32, %s23
        %p1941 = scmp.lt.s32.totalorder %s1940, 511
        %s1942 = scalar_select %p1941, %s1940, 511
        %p1943 = scmp.lt.s32.totalorder %s24, 0
        %s1944 = scalar_select %p1943, %s24, 0
        %s1945 = sadd.s32 %s1944, %s1942
        %s1946 = smul.addr %s1945, 4
        %s1947 = scalar_lea.vmem %s4, %s1946
      $region56: #{stem_forward.4} parent=51 // pred_fallthru
        _
    $region52: #{stem_forward.4} parent=5 // pred_fallthru
      _
  $region6: #{stem_forward.4} parent=0 // loop_footer
    %s14 = sadd.s32 1, %s10
  $region7: #{stem_forward.4} parent=0 // loop_footer_branch
    %9 = sbr.rel target = $region3
  $region8: #{stem_forward.4} parent=0 // loop_exit
    _

</llo_original>
